<compile_context>
chip_gen: v7x
topology: tpu7x:2x2x1
jax: 0.10.0
libtpu: 0.0.40
codegen_flags: <defaults>
</compile_context>

<pallas_src>
import functools
import math

import jax
import jax.numpy as jnp
from jax import lax
from jax.experimental import pallas as pl
from jax.experimental.pallas import tpu as pltpu


# ---------------------------------------------------------------------------
# Kernel 1: fused multi-head self-attention + residual + LayerNorm (+ non-pad mask)
# ---------------------------------------------------------------------------
def _mha_add_norm_kernel(*refs, num_heads, d_k, d_v, inv_temp, eps, has_mask, has_npm):
    it = iter(refs)
    xq_ref = next(it)     # (1, TQ, D)   query rows + residual
    xkv_ref = next(it)    # (1, L,  D)   key/value source (full sequence)
    wq_ref = next(it)     # (D, H*dk)
    wk_ref = next(it)     # (D, H*dk)
    wv_ref = next(it)     # (D, H*dv)
    wo_ref = next(it)     # (H*dv, D)
    gamma_ref = next(it)  # (1, D)
    beta_ref = next(it)   # (1, D)
    bias_ref = next(it) if has_mask else None   # (1, TQ, L) additive 0 / -1e30
    npm_ref = next(it) if has_npm else None     # (1, TQ, 1)
    out_ref = next(it)    # (1, TQ, D)

    f32 = jnp.float32
    xq = xq_ref[0]                      # input dtype -> feeds MXU directly
    xkv = xkv_ref[0]
    cdt = xq.dtype

    # Q/K/V projections: full-width, MXU-friendly matmuls with f32 accumulation.
    qf = jnp.dot(xq, wq_ref[...], preferred_element_type=f32).astype(cdt)   # (TQ, H*dk)
    kf = jnp.dot(xkv, wk_ref[...], preferred_element_type=f32).astype(cdt)  # (L,  H*dk)
    vf = jnp.dot(xkv, wv_ref[...], preferred_element_type=f32).astype(cdt)  # (L,  H*dv)

    tq = xq.shape[0]
    d_model = out_ref.shape[2]
    y = jnp.zeros((tq, d_model), f32)

    # All heads handled inside one grid step (unrolled), merge + out-projection fused.
    for h in range(num_heads):
        q_h = qf[:, h * d_k:(h + 1) * d_k]              # (TQ, dk)
        k_h = kf[:, h * d_k:(h + 1) * d_k]              # (L,  dk)
        v_h = vf[:, h * d_v:(h + 1) * d_v]              # (L,  dv)

        # scores = (q / temperature) @ k^T, contracting last dims (no explicit transpose).
        s = lax.dot_general(q_h, k_h, (((1,), (1,)), ((), ())),
                            preferred_element_type=f32) * inv_temp          # (TQ, L)
        if has_mask:
            s = s + bias_ref[0]                          # additive mask bias (f32)

        # Softmax in f32; denominator via EUP approx reciprocal.
        m = jnp.max(s, axis=-1, keepdims=True)
        e = jnp.exp(s - m)
        denom = jnp.sum(e, axis=-1, keepdims=True)
        p = e * pl.reciprocal(denom, approx=True)

        o = jnp.dot(p.astype(cdt), v_h, preferred_element_type=f32)         # (TQ, dv)
        y = y + jnp.dot(o.astype(cdt), wo_ref[h * d_v:(h + 1) * d_v, :],
                        preferred_element_type=f32)                         # (TQ, D)

    # Residual add + LayerNorm (+ optional non-pad mask) in f32.
    z = y + xq.astype(f32)
    mu = jnp.mean(z, axis=-1, keepdims=True)
    zc = z - mu
    var = jnp.mean(zc * zc, axis=-1, keepdims=True)
    zn = zc * lax.rsqrt(var + eps)
    outv = zn * gamma_ref[...].astype(f32) + beta_ref[...].astype(f32)
    if has_npm:
        outv = outv * npm_ref[0].astype(f32)
    out_ref[0] = outv.astype(out_ref.dtype)


def _mha_add_norm(x, wq, wk, wv, wo, gamma, beta, *, num_heads, inv_temp,
                  attn_bias=None, non_pad_mask=None, eps=1e-5, block_q=256):
    B, L, D = x.shape
    HDk = wq.shape[1]
    HDv = wv.shape[1]
    d_k = HDk // num_heads
    d_v = HDv // num_heads

    tq = block_q if (L > block_q and L % block_q == 0) else L
    nq = L // tq

    has_mask = attn_bias is not None
    has_npm = non_pad_mask is not None

    inputs = [x, x, wq, wk, wv, wo, gamma.reshape(1, D), beta.reshape(1, D)]
    in_specs = [
        pl.BlockSpec((1, tq, D), lambda b, qi: (b, qi, 0)),   # query / residual tile
        pl.BlockSpec((1, L, D), lambda b, qi: (b, 0, 0)),     # full K/V source
        pl.BlockSpec((D, HDk), lambda b, qi: (0, 0)),
        pl.BlockSpec((D, HDk), lambda b, qi: (0, 0)),
        pl.BlockSpec((D, HDv), lambda b, qi: (0, 0)),
        pl.BlockSpec((HDv, D), lambda b, qi: (0, 0)),
        pl.BlockSpec((1, D), lambda b, qi: (0, 0)),
        pl.BlockSpec((1, D), lambda b, qi: (0, 0)),
    ]
    if has_mask:
        inputs.append(attn_bias.astype(jnp.float32))
        in_specs.append(pl.BlockSpec((1, tq, L), lambda b, qi: (b, qi, 0)))
    if has_npm:
        inputs.append(non_pad_mask.astype(x.dtype))
        in_specs.append(pl.BlockSpec((1, tq, 1), lambda b, qi: (b, qi, 0)))

    kernel = functools.partial(
        _mha_add_norm_kernel, num_heads=num_heads, d_k=d_k, d_v=d_v,
        inv_temp=inv_temp, eps=eps, has_mask=has_mask, has_npm=has_npm)

    return pl.pallas_call(
        kernel,
        out_shape=jax.ShapeDtypeStruct((B, L, D), x.dtype),
        grid_spec=pltpu.PrefetchScalarGridSpec(
            num_scalar_prefetch=0,
            grid=(B, nq),
            in_specs=in_specs,
            out_specs=pl.BlockSpec((1, tq, D), lambda b, qi: (b, qi, 0)),
        ),
        compiler_params=pltpu.CompilerParams(
            dimension_semantics=("parallel", "parallel"),
            vmem_limit_bytes=64 * 1024 * 1024,
        ),
    )(*inputs)


# ---------------------------------------------------------------------------
# Kernel 2: fused position-wise FFN + residual + LayerNorm (+ non-pad mask)
# ---------------------------------------------------------------------------
def _ffn_add_norm_kernel(*refs, eps, has_npm):
    it = iter(refs)
    x_ref = next(it)       # (1, TQ, D)
    w1_ref = next(it)      # (D, Dff)
    b1_ref = next(it)      # (1, Dff)
    w2_ref = next(it)      # (Dff, D)
    b2_ref = next(it)      # (1, D)
    gamma_ref = next(it)   # (1, D)
    beta_ref = next(it)    # (1, D)
    npm_ref = next(it) if has_npm else None
    out_ref = next(it)     # (1, TQ, D)

    f32 = jnp.float32
    x = x_ref[0]
    cdt = x.dtype

    h = jnp.dot(x, w1_ref[...], preferred_element_type=f32) + b1_ref[...].astype(f32)
    h = jnp.maximum(h, 0.0).astype(cdt)
    y = jnp.dot(h, w2_ref[...], preferred_element_type=f32) + b2_ref[...].astype(f32)
    # TODO(synk): dropout is identity here (inference / eval-mode forward).

    z = y + x.astype(f32)
    mu = jnp.mean(z, axis=-1, keepdims=True)
    zc = z - mu
    var = jnp.mean(zc * zc, axis=-1, keepdims=True)
    zn = zc * lax.rsqrt(var + eps)
    outv = zn * gamma_ref[...].astype(f32) + beta_ref[...].astype(f32)
    if has_npm:
        outv = outv * npm_ref[0].astype(f32)
    out_ref[0] = outv.astype(out_ref.dtype)


def _ffn_add_norm(x, w1, b1, w2, b2, gamma, beta, *, non_pad_mask=None,
                  eps=1e-5, block_q=256):
    B, L, D = x.shape
    Dff = w1.shape[1]
    tq = block_q if (L > block_q and L % block_q == 0) else L
    nq = L // tq
    has_npm = non_pad_mask is not None

    inputs = [x, w1, b1.reshape(1, Dff), w2, b2.reshape(1, D),
              gamma.reshape(1, D), beta.reshape(1, D)]
    in_specs = [
        pl.BlockSpec((1, tq, D), lambda b, qi: (b, qi, 0)),
        pl.BlockSpec((D, Dff), lambda b, qi: (0, 0)),
        pl.BlockSpec((1, Dff), lambda b, qi: (0, 0)),
        pl.BlockSpec((Dff, D), lambda b, qi: (0, 0)),
        pl.BlockSpec((1, D), lambda b, qi: (0, 0)),
        pl.BlockSpec((1, D), lambda b, qi: (0, 0)),
        pl.BlockSpec((1, D), lambda b, qi: (0, 0)),
    ]
    if has_npm:
        inputs.append(non_pad_mask.astype(x.dtype))
        in_specs.append(pl.BlockSpec((1, tq, 1), lambda b, qi: (b, qi, 0)))

    kernel = functools.partial(_ffn_add_norm_kernel, eps=eps, has_npm=has_npm)

    return pl.pallas_call(
        kernel,
        out_shape=jax.ShapeDtypeStruct((B, L, D), x.dtype),
        grid_spec=pltpu.PrefetchScalarGridSpec(
            num_scalar_prefetch=0,
            grid=(B, nq),
            in_specs=in_specs,
            out_specs=pl.BlockSpec((1, tq, D), lambda b, qi: (b, qi, 0)),
        ),
        compiler_params=pltpu.CompilerParams(
            dimension_semantics=("parallel", "parallel"),
            vmem_limit_bytes=64 * 1024 * 1024,
        ),
    )(*inputs)


# ---------------------------------------------------------------------------
# Full TransformerDecoderLayer forward
# ---------------------------------------------------------------------------
def transformer_decoder_layer(x, params, *, num_heads, non_pad_mask=None, attn_mask=None):
    d_model = x.shape[-1]
    d_k = d_model // num_heads
    inv_temp = 1.0 / math.sqrt(num_heads * d_k)

    attn_bias = None
    if attn_mask is not None:
        # masked_fill(mask, -inf) -> additive bias 0 / -1e30 (NaN-safe, cheap in-kernel add)
        attn_bias = jnp.where(attn_mask, jnp.float32(-1e30), jnp.float32(0.0))

    # Sub-layer 1: masked self-attention + residual + LayerNorm1 (+ non-pad mask)
    x = _mha_add_norm(x, params["wq1"], params["wk1"], params["wv1"], params["wo1"],
                      params["g1"], params["be1"], num_heads=num_heads,
                      inv_temp=inv_temp, attn_bias=attn_bias,
                      non_pad_mask=non_pad_mask)
    # Sub-layer 2: self-attention (no mask -> specialized kernel) + residual + LayerNorm2
    x = _mha_add_norm(x, params["wq2"], params["wk2"], params["wv2"], params["wo2"],
                      params["g2"], params["be2"], num_heads=num_heads,
                      inv_temp=inv_temp, attn_bias=None,
                      non_pad_mask=non_pad_mask)
    # Sub-layer 3: position-wise FFN + residual + LayerNorm3
    x = _ffn_add_norm(x, params["w1"], params["b1"], params["w2"], params["b2"],
                      params["g3"], params["be3"], non_pad_mask=non_pad_mask)
    return x


# ---------------------------------------------------------------------------
# Pure-JAX reference (mirrors the PyTorch module, dropout = identity)
# ---------------------------------------------------------------------------
def _ref_layer_norm(x, gamma, beta, eps=1e-5):
    mu = jnp.mean(x, axis=-1, keepdims=True)
    var = jnp.mean((x - mu) ** 2, axis=-1, keepdims=True)
    return (x - mu) / jnp.sqrt(var + eps) * gamma + beta


def _ref_mha(x, wq, wk, wv, wo, num_heads, mask=None):
    B, L, _ = x.shape
    HDk = wq.shape[1]

    def split(t):
        return t.reshape(B, L, num_heads, -1).transpose(0, 2, 1, 3)

    q = split(x @ wq)
    k = split(x @ wk)
    v = split(x @ wv)
    temperature = math.sqrt(HDk)
    attn = jnp.matmul(q / temperature, jnp.swapaxes(k, -1, -2))
    if mask is not None:
        attn = jnp.where(mask[:, None, :, :], -jnp.inf, attn)
    attn = jax.nn.softmax(attn, axis=-1)
    out = jnp.matmul(attn, v)
    out = out.transpose(0, 2, 1, 3).reshape(B, L, -1)
    return out @ wo


def _ref_decoder_layer(x, p, num_heads, non_pad_mask=None, attn_mask=None):
    res = x
    x = _ref_mha(x, p["wq1"], p["wk1"], p["wv1"], p["wo1"], num_heads, mask=attn_mask)
    x = _ref_layer_norm(x + res, p["g1"], p["be1"])
    if non_pad_mask is not None:
        x = x * non_pad_mask
    res = x
    x = _ref_mha(x, p["wq2"], p["wk2"], p["wv2"], p["wo2"], num_heads)
    x = _ref_layer_norm(x + res, p["g2"], p["be2"])
    if non_pad_mask is not None:
        x = x * non_pad_mask
    res = x
    x = jnp.maximum(x @ p["w1"] + p["b1"], 0.0) @ p["w2"] + p["b2"]
    x = _ref_layer_norm(x + res, p["g3"], p["be3"])
    if non_pad_mask is not None:
        x = x * non_pad_mask
    return x


# ---------------------------------------------------------------------------
if __name__ == "__main__":
    key = jax.random.PRNGKey(0)
    B, L, d_model, num_heads, d_ff = 2, 8, 128, 4, 256
    d_k = d_model // num_heads

    keys = jax.random.split(key, 20)

    def lin(k, fan_in, fan_out):
        return jax.random.normal(k, (fan_in, fan_out), jnp.float32) / math.sqrt(fan_in)

    params = {
        "wq1": lin(keys[0], d_model, num_heads * d_k),
        "wk1": lin(keys[1], d_model, num_heads * d_k),
        "wv1": lin(keys[2], d_model, num_heads * d_k),
        "wo1": lin(keys[3], num_heads * d_k, d_model),
        "g1": 1.0 + 0.1 * jax.random.normal(keys[4], (d_model,), jnp.float32),
        "be1": 0.1 * jax.random.normal(keys[5], (d_model,), jnp.float32),
        "wq2": lin(keys[6], d_model, num_heads * d_k),
        "wk2": lin(keys[7], d_model, num_heads * d_k),
        "wv2": lin(keys[8], d_model, num_heads * d_k),
        "wo2": lin(keys[9], num_heads * d_k, d_model),
        "g2": 1.0 + 0.1 * jax.random.normal(keys[10], (d_model,), jnp.float32),
        "be2": 0.1 * jax.random.normal(keys[11], (d_model,), jnp.float32),
        "w1": lin(keys[12], d_model, d_ff),
        "b1": 0.1 * jax.random.normal(keys[13], (d_ff,), jnp.float32),
        "w2": lin(keys[14], d_ff, d_model),
        "b2": 0.1 * jax.random.normal(keys[15], (d_model,), jnp.float32),
        "g3": 1.0 + 0.1 * jax.random.normal(keys[16], (d_model,), jnp.float32),
        "be3": 0.1 * jax.random.normal(keys[17], (d_model,), jnp.float32),
    }

    x = jax.random.normal(keys[18], (B, L, d_model), jnp.float32)

    # Causal attention mask (True = masked out), broadcast over heads like the PyTorch module.
    causal = jnp.triu(jnp.ones((L, L), dtype=bool), k=1)
    attn_mask = jnp.broadcast_to(causal, (B, L, L))

    # Non-pad mask (B, L, 1); pad out the last two positions of batch 1.
    non_pad_mask = jnp.ones((B, L, 1), jnp.float32).at[1, L - 2:, :].set(0.0)

    out = transformer_decoder_layer(x, params, num_heads=num_heads,
                                    non_pad_mask=non_pad_mask, attn_mask=attn_mask)
    out = jax.block_until_ready(out)

    ref = _ref_decoder_layer(x, params, num_heads,
                             non_pad_mask=non_pad_mask, attn_mask=attn_mask)
    assert out.shape == ref.shape
    assert jnp.allclose(out, ref, atol=5e-3, rtol=5e-3), (
        float(jnp.max(jnp.abs(out - ref))))

    print("KERNEL_OK")
</pallas_src>

<mosaic_0001>
module attributes {stable_mosaic.version = 11 : i64} {
  func.func @_mha_add_norm_kernel(%arg0: i32, %arg1: i32, %arg2: memref<1x8x128xf32, #tpu.memory_space<vmem>>, %arg3: memref<1x8x128xf32, #tpu.memory_space<vmem>>, %arg4: memref<128x128xf32, #tpu.memory_space<vmem>>, %arg5: memref<128x128xf32, #tpu.memory_space<vmem>>, %arg6: memref<128x128xf32, #tpu.memory_space<vmem>>, %arg7: memref<128x128xf32, #tpu.memory_space<vmem>>, %arg8: memref<1x128xf32, #tpu.memory_space<vmem>>, %arg9: memref<1x128xf32, #tpu.memory_space<vmem>>, %arg10: memref<1x8x8xf32, #tpu.memory_space<vmem>>, %arg11: memref<1x8x1xf32, #tpu.memory_space<vmem>>, %arg12: memref<1x8x128xf32, #tpu.memory_space<vmem>>) attributes {dimension_semantics = [#tpu.dimension_semantics<parallel>, #tpu.dimension_semantics<parallel>], iteration_bounds = array<i64: 2, 1>, scalar_prefetch = 0 : i64, scratch_operands = 0 : i64, tpu.core_type = #tpu.core_type<tc>, window_params = [{transform_indices = @transform_0, window_bounds = array<i64: 1, 8, 128>}, {transform_indices = @transform_1, window_bounds = array<i64: 1, 8, 128>}, {pipeline_mode = #tpu.pipeline_mode<synchronous>, transform_indices = @transform_2, window_bounds = array<i64: 128, 128>}, {pipeline_mode = #tpu.pipeline_mode<synchronous>, transform_indices = @transform_3, window_bounds = array<i64: 128, 128>}, {pipeline_mode = #tpu.pipeline_mode<synchronous>, transform_indices = @transform_4, window_bounds = array<i64: 128, 128>}, {pipeline_mode = #tpu.pipeline_mode<synchronous>, transform_indices = @transform_5, window_bounds = array<i64: 128, 128>}, {pipeline_mode = #tpu.pipeline_mode<synchronous>, transform_indices = @transform_6, window_bounds = array<i64: 1, 128>}, {pipeline_mode = #tpu.pipeline_mode<synchronous>, transform_indices = @transform_7, window_bounds = array<i64: 1, 128>}, {transform_indices = @transform_8, window_bounds = array<i64: 1, 8, 8>}, {transform_indices = @transform_9, window_bounds = array<i64: 1, 8, 1>}, {transform_indices = @transform_10, window_bounds = array<i64: 1, 8, 128>}]} {
    %c0 = arith.constant 0 : index
    %c0_0 = arith.constant 0 : index
    %c0_1 = arith.constant 0 : index
    %0 = vector.load %arg2[%c0, %c0_0, %c0_1] : memref<1x8x128xf32, #tpu.memory_space<vmem>>, vector<1x8x128xf32>
    %1 = vector.shape_cast %0 : vector<1x8x128xf32> to vector<8x128xf32>
    %c0_2 = arith.constant 0 : index
    %c0_3 = arith.constant 0 : index
    %c0_4 = arith.constant 0 : index
    %2 = vector.load %arg3[%c0_2, %c0_3, %c0_4] : memref<1x8x128xf32, #tpu.memory_space<vmem>>, vector<1x8x128xf32>
    %3 = vector.shape_cast %2 : vector<1x8x128xf32> to vector<8x128xf32>
    %c0_5 = arith.constant 0 : index
    %c0_6 = arith.constant 0 : index
    %4 = vector.load %arg4[%c0_5, %c0_6] : memref<128x128xf32, #tpu.memory_space<vmem>>, vector<128x128xf32>
    %cst = arith.constant dense<0.000000e+00> : vector<8x128xf32>
    %5 = tpu.matmul %1, %4, %cst {dimension_numbers = #tpu.dot_dimension_numbers<[1], [0], [0], [1], [0, 0, 1, 1], [], []>} : vector<8x128xf32>, vector<128x128xf32>, vector<8x128xf32> -> vector<8x128xf32>
    %c0_7 = arith.constant 0 : index
    %c0_8 = arith.constant 0 : index
    %6 = vector.load %arg5[%c0_7, %c0_8] : memref<128x128xf32, #tpu.memory_space<vmem>>, vector<128x128xf32>
    %cst_9 = arith.constant dense<0.000000e+00> : vector<8x128xf32>
    %7 = tpu.matmul %3, %6, %cst_9 {dimension_numbers = #tpu.dot_dimension_numbers<[1], [0], [0], [1], [0, 0, 1, 1], [], []>} : vector<8x128xf32>, vector<128x128xf32>, vector<8x128xf32> -> vector<8x128xf32>
    %c0_10 = arith.constant 0 : index
    %c0_11 = arith.constant 0 : index
    %8 = vector.load %arg6[%c0_10, %c0_11] : memref<128x128xf32, #tpu.memory_space<vmem>>, vector<128x128xf32>
    %cst_12 = arith.constant dense<0.000000e+00> : vector<8x128xf32>
    %9 = tpu.matmul %3, %8, %cst_12 {dimension_numbers = #tpu.dot_dimension_numbers<[1], [0], [0], [1], [0, 0, 1, 1], [], []>} : vector<8x128xf32>, vector<128x128xf32>, vector<8x128xf32> -> vector<8x128xf32>
    %cst_13 = arith.constant 0.000000e+00 : f32
    %10 = vector.broadcast %cst_13 : f32 to vector<8x128xf32>
    %11 = vector.extract_strided_slice %5 {offsets = [0, 0], sizes = [8, 32], strides = [1, 1]} : vector<8x128xf32> to vector<8x32xf32>
    %12 = vector.extract_strided_slice %7 {offsets = [0, 0], sizes = [8, 32], strides = [1, 1]} : vector<8x128xf32> to vector<8x32xf32>
    %13 = vector.extract_strided_slice %9 {offsets = [0, 0], sizes = [8, 32], strides = [1, 1]} : vector<8x128xf32> to vector<8x32xf32>
    %cst_14 = arith.constant dense<0.000000e+00> : vector<8x8xf32>
    %14 = tpu.matmul %11, %12, %cst_14 {dimension_numbers = #tpu.dot_dimension_numbers<[1], [1], [0], [0], [0, 0, 1, 0], [], []>} : vector<8x32xf32>, vector<8x32xf32>, vector<8x8xf32> -> vector<8x8xf32>
    %cst_15 = arith.constant 0.0883883461 : f32
    %15 = vector.broadcast %cst_15 : f32 to vector<8x8xf32>
    %16 = arith.mulf %14, %15 : vector<8x8xf32>
    %c0_16 = arith.constant 0 : index
    %c0_17 = arith.constant 0 : index
    %c0_18 = arith.constant 0 : index
    %17 = vector.load %arg10[%c0_16, %c0_17, %c0_18] : memref<1x8x8xf32, #tpu.memory_space<vmem>>, vector<1x8x8xf32>
    %18 = vector.shape_cast %17 : vector<1x8x8xf32> to vector<8x8xf32>
    %19 = arith.addf %16, %18 : vector<8x8xf32>
    %cst_19 = arith.constant dense<0xFF800000> : vector<8xf32>
    %20 = vector.multi_reduction <maximumf>, %19, %cst_19 [1] : vector<8x8xf32> to vector<8xf32>
    %21 = vector.shape_cast %20 : vector<8xf32> to vector<8x1xf32>
    %22 = vector.broadcast %21 : vector<8x1xf32> to vector<8x8xf32>
    %23 = arith.subf %19, %22 : vector<8x8xf32>
    %24 = math.exp %23 : vector<8x8xf32>
    %cst_20 = arith.constant dense<0.000000e+00> : vector<8xf32>
    %25 = vector.multi_reduction <add>, %24, %cst_20 [1] : vector<8x8xf32> to vector<8xf32>
    %26 = vector.shape_cast %25 : vector<8xf32> to vector<8x1xf32>
    %27 = tpu.reciprocal %26 {approx = true} : vector<8x1xf32> -> vector<8x1xf32>
    %28 = vector.broadcast %27 : vector<8x1xf32> to vector<8x8xf32>
    %29 = arith.mulf %24, %28 : vector<8x8xf32>
    %cst_21 = arith.constant dense<0.000000e+00> : vector<8x32xf32>
    %30 = tpu.matmul %29, %13, %cst_21 {dimension_numbers = #tpu.dot_dimension_numbers<[1], [0], [0], [1], [0, 0, 1, 1], [], []>} : vector<8x8xf32>, vector<8x32xf32>, vector<8x32xf32> -> vector<8x32xf32>
    %c0_22 = arith.constant 0 : index
    %c0_23 = arith.constant 0 : index
    %31 = vector.load %arg7[%c0_22, %c0_23] : memref<128x128xf32, #tpu.memory_space<vmem>>, vector<32x128xf32>
    %cst_24 = arith.constant dense<0.000000e+00> : vector<8x128xf32>
    %32 = tpu.matmul %30, %31, %cst_24 {dimension_numbers = #tpu.dot_dimension_numbers<[1], [0], [0], [1], [0, 0, 1, 1], [], []>} : vector<8x32xf32>, vector<32x128xf32>, vector<8x128xf32> -> vector<8x128xf32>
    %33 = arith.addf %10, %32 : vector<8x128xf32>
    %34 = vector.extract_strided_slice %5 {offsets = [0, 32], sizes = [8, 32], strides = [1, 1]} : vector<8x128xf32> to vector<8x32xf32>
    %35 = vector.extract_strided_slice %7 {offsets = [0, 32], sizes = [8, 32], strides = [1, 1]} : vector<8x128xf32> to vector<8x32xf32>
    %36 = vector.extract_strided_slice %9 {offsets = [0, 32], sizes = [8, 32], strides = [1, 1]} : vector<8x128xf32> to vector<8x32xf32>
    %cst_25 = arith.constant dense<0.000000e+00> : vector<8x8xf32>
    %37 = tpu.matmul %34, %35, %cst_25 {dimension_numbers = #tpu.dot_dimension_numbers<[1], [1], [0], [0], [0, 0, 1, 0], [], []>} : vector<8x32xf32>, vector<8x32xf32>, vector<8x8xf32> -> vector<8x8xf32>
    %cst_26 = arith.constant 0.0883883461 : f32
    %38 = vector.broadcast %cst_26 : f32 to vector<8x8xf32>
    %39 = arith.mulf %37, %38 : vector<8x8xf32>
    %c0_27 = arith.constant 0 : index
    %c0_28 = arith.constant 0 : index
    %c0_29 = arith.constant 0 : index
    %40 = vector.load %arg10[%c0_27, %c0_28, %c0_29] : memref<1x8x8xf32, #tpu.memory_space<vmem>>, vector<1x8x8xf32>
    %41 = vector.shape_cast %40 : vector<1x8x8xf32> to vector<8x8xf32>
    %42 = arith.addf %39, %41 : vector<8x8xf32>
    %cst_30 = arith.constant dense<0xFF800000> : vector<8xf32>
    %43 = vector.multi_reduction <maximumf>, %42, %cst_30 [1] : vector<8x8xf32> to vector<8xf32>
    %44 = vector.shape_cast %43 : vector<8xf32> to vector<8x1xf32>
    %45 = vector.broadcast %44 : vector<8x1xf32> to vector<8x8xf32>
    %46 = arith.subf %42, %45 : vector<8x8xf32>
    %47 = math.exp %46 : vector<8x8xf32>
    %cst_31 = arith.constant dense<0.000000e+00> : vector<8xf32>
    %48 = vector.multi_reduction <add>, %47, %cst_31 [1] : vector<8x8xf32> to vector<8xf32>
    %49 = vector.shape_cast %48 : vector<8xf32> to vector<8x1xf32>
    %50 = tpu.reciprocal %49 {approx = true} : vector<8x1xf32> -> vector<8x1xf32>
    %51 = vector.broadcast %50 : vector<8x1xf32> to vector<8x8xf32>
    %52 = arith.mulf %47, %51 : vector<8x8xf32>
    %cst_32 = arith.constant dense<0.000000e+00> : vector<8x32xf32>
    %53 = tpu.matmul %52, %36, %cst_32 {dimension_numbers = #tpu.dot_dimension_numbers<[1], [0], [0], [1], [0, 0, 1, 1], [], []>} : vector<8x8xf32>, vector<8x32xf32>, vector<8x32xf32> -> vector<8x32xf32>
    %c32 = arith.constant 32 : index
    %c0_33 = arith.constant 0 : index
    %54 = vector.load %arg7[%c32, %c0_33] : memref<128x128xf32, #tpu.memory_space<vmem>>, vector<32x128xf32>
    %cst_34 = arith.constant dense<0.000000e+00> : vector<8x128xf32>
    %55 = tpu.matmul %53, %54, %cst_34 {dimension_numbers = #tpu.dot_dimension_numbers<[1], [0], [0], [1], [0, 0, 1, 1], [], []>} : vector<8x32xf32>, vector<32x128xf32>, vector<8x128xf32> -> vector<8x128xf32>
    %56 = arith.addf %33, %55 : vector<8x128xf32>
    %57 = vector.extract_strided_slice %5 {offsets = [0, 64], sizes = [8, 32], strides = [1, 1]} : vector<8x128xf32> to vector<8x32xf32>
    %58 = vector.extract_strided_slice %7 {offsets = [0, 64], sizes = [8, 32], strides = [1, 1]} : vector<8x128xf32> to vector<8x32xf32>
    %59 = vector.extract_strided_slice %9 {offsets = [0, 64], sizes = [8, 32], strides = [1, 1]} : vector<8x128xf32> to vector<8x32xf32>
    %cst_35 = arith.constant dense<0.000000e+00> : vector<8x8xf32>
    %60 = tpu.matmul %57, %58, %cst_35 {dimension_numbers = #tpu.dot_dimension_numbers<[1], [1], [0], [0], [0, 0, 1, 0], [], []>} : vector<8x32xf32>, vector<8x32xf32>, vector<8x8xf32> -> vector<8x8xf32>
    %cst_36 = arith.constant 0.0883883461 : f32
    %61 = vector.broadcast %cst_36 : f32 to vector<8x8xf32>
    %62 = arith.mulf %60, %61 : vector<8x8xf32>
    %c0_37 = arith.constant 0 : index
    %c0_38 = arith.constant 0 : index
    %c0_39 = arith.constant 0 : index
    %63 = vector.load %arg10[%c0_37, %c0_38, %c0_39] : memref<1x8x8xf32, #tpu.memory_space<vmem>>, vector<1x8x8xf32>
    %64 = vector.shape_cast %63 : vector<1x8x8xf32> to vector<8x8xf32>
    %65 = arith.addf %62, %64 : vector<8x8xf32>
    %cst_40 = arith.constant dense<0xFF800000> : vector<8xf32>
    %66 = vector.multi_reduction <maximumf>, %65, %cst_40 [1] : vector<8x8xf32> to vector<8xf32>
    %67 = vector.shape_cast %66 : vector<8xf32> to vector<8x1xf32>
    %68 = vector.broadcast %67 : vector<8x1xf32> to vector<8x8xf32>
    %69 = arith.subf %65, %68 : vector<8x8xf32>
    %70 = math.exp %69 : vector<8x8xf32>
    %cst_41 = arith.constant dense<0.000000e+00> : vector<8xf32>
    %71 = vector.multi_reduction <add>, %70, %cst_41 [1] : vector<8x8xf32> to vector<8xf32>
    %72 = vector.shape_cast %71 : vector<8xf32> to vector<8x1xf32>
    %73 = tpu.reciprocal %72 {approx = true} : vector<8x1xf32> -> vector<8x1xf32>
    %74 = vector.broadcast %73 : vector<8x1xf32> to vector<8x8xf32>
    %75 = arith.mulf %70, %74 : vector<8x8xf32>
    %cst_42 = arith.constant dense<0.000000e+00> : vector<8x32xf32>
    %76 = tpu.matmul %75, %59, %cst_42 {dimension_numbers = #tpu.dot_dimension_numbers<[1], [0], [0], [1], [0, 0, 1, 1], [], []>} : vector<8x8xf32>, vector<8x32xf32>, vector<8x32xf32> -> vector<8x32xf32>
    %c64 = arith.constant 64 : index
    %c0_43 = arith.constant 0 : index
    %77 = vector.load %arg7[%c64, %c0_43] : memref<128x128xf32, #tpu.memory_space<vmem>>, vector<32x128xf32>
    %cst_44 = arith.constant dense<0.000000e+00> : vector<8x128xf32>
    %78 = tpu.matmul %76, %77, %cst_44 {dimension_numbers = #tpu.dot_dimension_numbers<[1], [0], [0], [1], [0, 0, 1, 1], [], []>} : vector<8x32xf32>, vector<32x128xf32>, vector<8x128xf32> -> vector<8x128xf32>
    %79 = arith.addf %56, %78 : vector<8x128xf32>
    %80 = vector.extract_strided_slice %5 {offsets = [0, 96], sizes = [8, 32], strides = [1, 1]} : vector<8x128xf32> to vector<8x32xf32>
    %81 = vector.extract_strided_slice %7 {offsets = [0, 96], sizes = [8, 32], strides = [1, 1]} : vector<8x128xf32> to vector<8x32xf32>
    %82 = vector.extract_strided_slice %9 {offsets = [0, 96], sizes = [8, 32], strides = [1, 1]} : vector<8x128xf32> to vector<8x32xf32>
    %cst_45 = arith.constant dense<0.000000e+00> : vector<8x8xf32>
    %83 = tpu.matmul %80, %81, %cst_45 {dimension_numbers = #tpu.dot_dimension_numbers<[1], [1], [0], [0], [0, 0, 1, 0], [], []>} : vector<8x32xf32>, vector<8x32xf32>, vector<8x8xf32> -> vector<8x8xf32>
    %cst_46 = arith.constant 0.0883883461 : f32
    %84 = vector.broadcast %cst_46 : f32 to vector<8x8xf32>
    %85 = arith.mulf %83, %84 : vector<8x8xf32>
    %c0_47 = arith.constant 0 : index
    %c0_48 = arith.constant 0 : index
    %c0_49 = arith.constant 0 : index
    %86 = vector.load %arg10[%c0_47, %c0_48, %c0_49] : memref<1x8x8xf32, #tpu.memory_space<vmem>>, vector<1x8x8xf32>
    %87 = vector.shape_cast %86 : vector<1x8x8xf32> to vector<8x8xf32>
    %88 = arith.addf %85, %87 : vector<8x8xf32>
    %cst_50 = arith.constant dense<0xFF800000> : vector<8xf32>
    %89 = vector.multi_reduction <maximumf>, %88, %cst_50 [1] : vector<8x8xf32> to vector<8xf32>
    %90 = vector.shape_cast %89 : vector<8xf32> to vector<8x1xf32>
    %91 = vector.broadcast %90 : vector<8x1xf32> to vector<8x8xf32>
    %92 = arith.subf %88, %91 : vector<8x8xf32>
    %93 = math.exp %92 : vector<8x8xf32>
    %cst_51 = arith.constant dense<0.000000e+00> : vector<8xf32>
    %94 = vector.multi_reduction <add>, %93, %cst_51 [1] : vector<8x8xf32> to vector<8xf32>
    %95 = vector.shape_cast %94 : vector<8xf32> to vector<8x1xf32>
    %96 = tpu.reciprocal %95 {approx = true} : vector<8x1xf32> -> vector<8x1xf32>
    %97 = vector.broadcast %96 : vector<8x1xf32> to vector<8x8xf32>
    %98 = arith.mulf %93, %97 : vector<8x8xf32>
    %cst_52 = arith.constant dense<0.000000e+00> : vector<8x32xf32>
    %99 = tpu.matmul %98, %82, %cst_52 {dimension_numbers = #tpu.dot_dimension_numbers<[1], [0], [0], [1], [0, 0, 1, 1], [], []>} : vector<8x8xf32>, vector<8x32xf32>, vector<8x32xf32> -> vector<8x32xf32>
    %c96 = arith.constant 96 : index
    %c0_53 = arith.constant 0 : index
    %100 = vector.load %arg7[%c96, %c0_53] : memref<128x128xf32, #tpu.memory_space<vmem>>, vector<32x128xf32>
    %cst_54 = arith.constant dense<0.000000e+00> : vector<8x128xf32>
    %101 = tpu.matmul %99, %100, %cst_54 {dimension_numbers = #tpu.dot_dimension_numbers<[1], [0], [0], [1], [0, 0, 1, 1], [], []>} : vector<8x32xf32>, vector<32x128xf32>, vector<8x128xf32> -> vector<8x128xf32>
    %102 = arith.addf %79, %101 : vector<8x128xf32>
    %103 = arith.addf %102, %1 : vector<8x128xf32>
    %cst_55 = arith.constant dense<0.000000e+00> : vector<8xf32>
    %104 = vector.multi_reduction <add>, %103, %cst_55 [1] : vector<8x128xf32> to vector<8xf32>
    %105 = vector.shape_cast %104 : vector<8xf32> to vector<8x1xf32>
    %cst_56 = arith.constant 1.280000e+02 : f32
    %106 = vector.broadcast %cst_56 : f32 to vector<8x1xf32>
    %107 = arith.divf %105, %106 : vector<8x1xf32>
    %108 = vector.broadcast %107 : vector<8x1xf32> to vector<8x128xf32>
    %109 = arith.subf %103, %108 : vector<8x128xf32>
    %110 = arith.mulf %109, %109 : vector<8x128xf32>
    %cst_57 = arith.constant dense<0.000000e+00> : vector<8xf32>
    %111 = vector.multi_reduction <add>, %110, %cst_57 [1] : vector<8x128xf32> to vector<8xf32>
    %112 = vector.shape_cast %111 : vector<8xf32> to vector<8x1xf32>
    %cst_58 = arith.constant 1.280000e+02 : f32
    %113 = vector.broadcast %cst_58 : f32 to vector<8x1xf32>
    %114 = arith.divf %112, %113 : vector<8x1xf32>
    %cst_59 = arith.constant 9.99999974E-6 : f32
    %115 = vector.broadcast %cst_59 : f32 to vector<8x1xf32>
    %116 = arith.addf %114, %115 : vector<8x1xf32>
    %117 = math.rsqrt %116 : vector<8x1xf32>
    %118 = vector.broadcast %117 : vector<8x1xf32> to vector<8x128xf32>
    %119 = arith.mulf %109, %118 : vector<8x128xf32>
    %c0_60 = arith.constant 0 : index
    %c0_61 = arith.constant 0 : index
    %120 = vector.load %arg8[%c0_60, %c0_61] : memref<1x128xf32, #tpu.memory_space<vmem>>, vector<1x128xf32>
    %121 = vector.broadcast %120 : vector<1x128xf32> to vector<8x128xf32>
    %122 = arith.mulf %119, %121 : vector<8x128xf32>
    %c0_62 = arith.constant 0 : index
    %c0_63 = arith.constant 0 : index
    %123 = vector.load %arg9[%c0_62, %c0_63] : memref<1x128xf32, #tpu.memory_space<vmem>>, vector<1x128xf32>
    %124 = vector.broadcast %123 : vector<1x128xf32> to vector<8x128xf32>
    %125 = arith.addf %122, %124 : vector<8x128xf32>
    %c0_64 = arith.constant 0 : index
    %c0_65 = arith.constant 0 : index
    %c0_66 = arith.constant 0 : index
    %126 = vector.load %arg11[%c0_64, %c0_65, %c0_66] : memref<1x8x1xf32, #tpu.memory_space<vmem>>, vector<1x8x1xf32>
    %127 = vector.shape_cast %126 : vector<1x8x1xf32> to vector<8x1xf32>
    %128 = vector.broadcast %127 : vector<8x1xf32> to vector<8x128xf32>
    %129 = arith.mulf %125, %128 : vector<8x128xf32>
    %c0_67 = arith.constant 0 : index
    %c0_68 = arith.constant 0 : index
    %c0_69 = arith.constant 0 : index
    %130 = vector.load %arg12[%c0_67, %c0_68, %c0_69] : memref<1x8x128xf32, #tpu.memory_space<vmem>>, vector<1x8x128xf32>
    %131 = vector.shape_cast %130 : vector<1x8x128xf32> to vector<8x128xf32>
    %132 = vector.shape_cast %129 : vector<8x128xf32> to vector<1x8x128xf32>
    tpu.vector_store %arg12[%c0_67, %c0_68, %c0_69], %132 {strides = array<i32>} : memref<1x8x128xf32, #tpu.memory_space<vmem>>, vector<1x8x128xf32>,
    return
  }
  func.func @transform_0(%arg0: i32, %arg1: i32) -> (i32, i32, i32) {
    %c0_i32 = arith.constant 0 : i32
    %c0_i32_0 = arith.constant 0 : i32
    return %arg0, %arg1, %c0_i32 : i32, i32, i32
  }
  func.func @transform_1(%arg0: i32, %arg1: i32) -> (i32, i32, i32) {
    %c0_i32 = arith.constant 0 : i32
    %c0_i32_0 = arith.constant 0 : i32
    %c0_i32_1 = arith.constant 0 : i32
    return %arg0, %c0_i32, %c0_i32_0 : i32, i32, i32
  }
  func.func @transform_2(%arg0: i32, %arg1: i32) -> (i32, i32) {
    %c0_i32 = arith.constant 0 : i32
    %c0_i32_0 = arith.constant 0 : i32
    %c0_i32_1 = arith.constant 0 : i32
    return %c0_i32, %c0_i32_0 : i32, i32
  }
  func.func @transform_3(%arg0: i32, %arg1: i32) -> (i32, i32) {
    %c0_i32 = arith.constant 0 : i32
    %c0_i32_0 = arith.constant 0 : i32
    %c0_i32_1 = arith.constant 0 : i32
    return %c0_i32, %c0_i32_0 : i32, i32
  }
  func.func @transform_4(%arg0: i32, %arg1: i32) -> (i32, i32) {
    %c0_i32 = arith.constant 0 : i32
    %c0_i32_0 = arith.constant 0 : i32
    %c0_i32_1 = arith.constant 0 : i32
    return %c0_i32, %c0_i32_0 : i32, i32
  }
  func.func @transform_5(%arg0: i32, %arg1: i32) -> (i32, i32) {
    %c0_i32 = arith.constant 0 : i32
    %c0_i32_0 = arith.constant 0 : i32
    %c0_i32_1 = arith.constant 0 : i32
    return %c0_i32, %c0_i32_0 : i32, i32
  }
  func.func @transform_6(%arg0: i32, %arg1: i32) -> (i32, i32) {
    %c0_i32 = arith.constant 0 : i32
    %c0_i32_0 = arith.constant 0 : i32
    %c0_i32_1 = arith.constant 0 : i32
    return %c0_i32, %c0_i32_0 : i32, i32
  }
  func.func @transform_7(%arg0: i32, %arg1: i32) -> (i32, i32) {
    %c0_i32 = arith.constant 0 : i32
    %c0_i32_0 = arith.constant 0 : i32
    %c0_i32_1 = arith.constant 0 : i32
    return %c0_i32, %c0_i32_0 : i32, i32
  }
  func.func @transform_8(%arg0: i32, %arg1: i32) -> (i32, i32, i32) {
    %c0_i32 = arith.constant 0 : i32
    %c0_i32_0 = arith.constant 0 : i32
    return %arg0, %arg1, %c0_i32 : i32, i32, i32
  }
  func.func @transform_9(%arg0: i32, %arg1: i32) -> (i32, i32, i32) {
    %c0_i32 = arith.constant 0 : i32
    %c0_i32_0 = arith.constant 0 : i32
    return %arg0, %arg1, %c0_i32 : i32, i32, i32
  }
  func.func @transform_10(%arg0: i32, %arg1: i32) -> (i32, i32, i32) {
    %c0_i32 = arith.constant 0 : i32
    %c0_i32_0 = arith.constant 0 : i32
    return %arg0, %arg1, %c0_i32 : i32, i32, i32
  }
}

</mosaic_0001>

<llo_original>
// kernel: tpu_custom_call.1
$region0: #{tpu_custom_call.1}
  #allocation0 [shape = 'u32[]', space=smem, size = 0x4, offset = 0x4, fixed_abs, tag = 'smem constant byte address 0x4 - core index']
  #allocation1 [shape = 'u32[144,128]{1,0:T(1,128)}', space=vmem, size = 0x12000, scoped, tag = 'internal scratch']
  %s0 = inlined_call_operand.hbm [shape: f32[2,8,128], index: 0, kind: input, shape index: {}]
  %s1 = inlined_call_operand.hbm [shape: f32[2,8,128], index: 1, kind: input, shape index: {}]
  %s2 = inlined_call_operand.hbm [shape: f32[128,128], index: 2, kind: input, shape index: {}]
  %s3 = inlined_call_operand.hbm [shape: f32[128,128], index: 3, kind: input, shape index: {}]
  %s4 = inlined_call_operand.hbm [shape: f32[128,128], index: 4, kind: input, shape index: {}]
  %s5 = inlined_call_operand.hbm [shape: f32[128,128], index: 5, kind: input, shape index: {}]
  %s6 = inlined_call_operand.hbm [shape: f32[1,128], index: 6, kind: input, shape index: {}]
  %s7 = inlined_call_operand.hbm [shape: f32[1,128], index: 7, kind: input, shape index: {}]
  %s8 = inlined_call_operand.hbm [shape: f32[2,8,8], index: 8, kind: input, shape index: {}]
  %s9 = inlined_call_operand.hbm [shape: f32[2,8,1], index: 9, kind: input, shape index: {}]
  %s10 = inlined_call_operand.hbm [shape: f32[2,8,128], index: 10, kind: output, shape index: {}]
  %s11 = sld [smem:[#allocation0]]
  $region113: #{tpu_custom_call.1} parent=0
    _
  %s13 = ssub.s32 1, %s11
  %s14 = scalar_select 0, %s13, %s11
  $region1: #{tpu_custom_call.1} parent=0
    #allocation2 [shape = 'u8[8192]{0}', space=vmem, size = 0x2000, scoped, tag = 'input window, operand 0']
    #allocation3 [shape = 's32[2]{0}', space=sflag, size = 0x8, scoped, tag = 'scoped memory for tpu_custom_call.1']
    #allocation4 [shape = 's32[2]{0}', space=sflag, size = 0x8, scoped, tag = 'scoped memory for tpu_custom_call.1']
    #allocation5 [shape = 'u8[8192]{0}', space=vmem, size = 0x2000, scoped, tag = 'input window, operand 1']
    #allocation6 [shape = 's32[2]{0}', space=sflag, size = 0x8, scoped, tag = 'scoped memory for tpu_custom_call.1']
    #allocation7 [shape = 'u8[65536]{0}', space=vmem, size = 0x10000, scoped, tag = 'input window, operand 2, single buffered']
    #allocation8 [shape = 'u8[65536]{0}', space=vmem, size = 0x10000, scoped, tag = 'input window, operand 3, single buffered']
    #allocation9 [shape = 's32[1]{0}', space=sflag, size = 0x4, scoped, tag = 'scoped memory for tpu_custom_call.1']
    #allocation10 [shape = 'u8[65536]{0}', space=vmem, size = 0x10000, scoped, tag = 'input window, operand 4, single buffered']
    #allocation11 [shape = 'u8[65536]{0}', space=vmem, size = 0x10000, scoped, tag = 'input window, operand 5, single buffered']
    #allocation12 [shape = 's32[1]{0}', space=sflag, size = 0x4, scoped, tag = 'scoped memory for tpu_custom_call.1']
    #allocation13 [shape = 'u8[512]{0}', space=vmem, size = 0x400, scoped, tag = 'input window, operand 6, single buffered']
    #allocation14 [shape = 'u8[512]{0}', space=vmem, size = 0x400, scoped, tag = 'input window, operand 7, single buffered']
    #allocation15 [shape = 's32[1]{0}', space=sflag, size = 0x4, scoped, tag = 'scoped memory for tpu_custom_call.1']
    #allocation16 [shape = 'u8[8192]{0}', space=vmem, size = 0x2000, scoped, tag = 'input window, operand 8']
    #allocation17 [shape = 'u8[8192]{0}', space=vmem, size = 0x2000, scoped, tag = 'input window, operand 9']
    #allocation18 [shape = 'u8[8192]{0}', space=vmem, size = 0x2000, scoped, tag = 'output window, operand 0']
    %15 = vsyncpa [#allocation3], 0
    %s16 = scalar_lea.sflag [#allocation3], 1
    %17 = vsyncpa %s16, 0
    %18 = vsyncpa [#allocation6], 0
    %s19 = scalar_lea.sflag [#allocation6], 1
    %20 = vsyncpa %s19, 0
    %21 = vsyncpa [#allocation9], 0
    %22 = vsyncpa [#allocation12], 0
    %23 = vsyncpa [#allocation15], 0
    %24 = vsyncpa [#allocation4], 0
    %s25 = scalar_lea.sflag [#allocation4], 1
    %26 = vsyncpa %s25, 0
    loop: start=0, step=1, limit=4
    $region2: #{tpu_custom_call.1} parent=1 // loop_pre_header
      _
    $region3: #{tpu_custom_call.1} parent=1 // loop_header
      %s28 = sphi 0, %s32
      %p29 = scmp.ge.s32.totalorder %s28, 4
      %s35 = sphi 0, %s47
      %s36 = sphi 0, %s43
      %s37 = sphi 0, %s35
      %s38 = sphi 0, %s36
      %s39 = sphi 0, %s37
      %s40 = sphi 0, %s38
      %s52 = sphi 0, %s54
      %s55 = sphi 0, %s52
      %s56 = sphi 0, %s55
      %s72 = sphi 0, %s56
      %s78 = sphi 0, %s80
      %s81 = sphi 0, %s78
      %s82 = sphi 0, %s81
      %s98 = sphi 0, %s82
      %s102 = sphi 0, %s102
      %s104 = sphi 0, %s102
      %s105 = sphi 0, %s104
      %s119 = sphi 0, %s105
      %s123 = sphi 0, %s123
      %s125 = sphi 0, %s123
      %s126 = sphi 0, %s125
      %s140 = sphi 0, %s126
      %s144 = sphi 0, %s144
      %s146 = sphi 0, %s144
      %s147 = sphi 0, %s146
      %s161 = sphi 0, %s147
      %s165 = sphi 0, %s165
      %s167 = sphi 0, %s165
      %s168 = sphi 0, %s167
      %s182 = sphi 0, %s168
      %s186 = sphi 0, %s186
      %s188 = sphi 0, %s186
      %s189 = sphi 0, %s188
      %s203 = sphi 0, %s189
      %s207 = sphi 0, %s207
      %s209 = sphi 0, %s207
      %s210 = sphi 0, %s209
      %s224 = sphi 0, %s210
      %s232 = sphi 0, %s234
      %s235 = sphi 0, %s232
      %s236 = sphi 0, %s235
      %s252 = sphi 0, %s236
      %s260 = sphi 0, %s262
      %s263 = sphi 0, %s260
      %s264 = sphi 0, %s263
      %s280 = sphi 0, %s264
      %s288 = sphi 0, %s290
      %s291 = sphi 0, %s288
      %s292 = sphi 0, %s291
      %s308 = sphi 0, %s292
    $region4: #{tpu_custom_call.1} parent=1 // loop_header_branch
      %31 = sbr.rel (%p29) target = $region8
    $region5: #{tpu_custom_call.1} parent=1 // loop_body
      %s33 = ssub.s32 %s28, 1
      %s34 = ssub.s32 %s28, 2
      %s41 = sadd.s32 1, %s36
      %p42 = scmp.ge.s32.totalorder %s41, 1
      %s43 = scalar_select %p42, 0, %s41
      %s44 = sadd.s32 1, %s35
      %s45 = scalar_select %p42, %s44, %s35
      %p46 = scmp.ge.s32.totalorder %s45, 2
      %s47 = scalar_select %p46, 0, %s45
      %s48 = ssub.s32 %s35, %s47
      %s49 = ssub.s32 %s36, %s43
      %s50 = sor.u32 %s48, %s49
      %p51 = scmp.eq.s32.totalorder %s50, 0
      %s53 = sadd.s32 %s52, 1
      %s54 = scalar_select %p51, %s52, %s53
      %p57 = pneg %p51
      %p58 = scmp.eq.s32.totalorder %s28, 1
      %p59 = por %p57, %p58
      %p60 = scmp.ne.s32.totalorder %s52, %s55
      %p61 = scmp.eq.s32.totalorder %s28, 0
      %p62 = por %p60, %p61
      %p63 = scmp.ne.s32.totalorder %s52, %s55
      %p64 = scmp.eq.s32.totalorder %s33, 1
      %p65 = por %p63, %p64
      %p66 = scmp.ne.s32.totalorder %s55, %s56
      %p67 = scmp.eq.s32.totalorder %s33, 0
      %p68 = por %p66, %p67
      %p69 = scmp.ne.s32.totalorder %s55, %s56
      %p70 = scmp.eq.s32.totalorder %s34, 1
      %p71 = por %p69, %p70
      %p73 = scmp.ne.s32.totalorder %s56, %s72
      %p74 = scmp.eq.s32.totalorder %s34, 0
      %p75 = por %p73, %p74
      %s76 = ssub.s32 %s35, %s47
      %p77 = scmp.eq.s32.totalorder %s76, 0
      %s79 = sadd.s32 %s78, 1
      %s80 = scalar_select %p77, %s78, %s79
      %p83 = pneg %p77
      %p84 = scmp.eq.s32.totalorder %s28, 1
      %p85 = por %p83, %p84
      %p86 = scmp.ne.s32.totalorder %s78, %s81
      %p87 = scmp.eq.s32.totalorder %s28, 0
      %p88 = por %p86, %p87
      %p89 = scmp.ne.s32.totalorder %s78, %s81
      %p90 = scmp.eq.s32.totalorder %s33, 1
      %p91 = por %p89, %p90
      %p92 = scmp.ne.s32.totalorder %s81, %s82
      %p93 = scmp.eq.s32.totalorder %s33, 0
      %p94 = por %p92, %p93
      %p95 = scmp.ne.s32.totalorder %s81, %s82
      %p96 = scmp.eq.s32.totalorder %s34, 1
      %p97 = por %p95, %p96
      %p99 = scmp.ne.s32.totalorder %s82, %s98
      %p100 = scmp.eq.s32.totalorder %s34, 0
      %p101 = por %p99, %p100
      %s103 = sadd.s32 %s102, 1
      %p106 = scmp.eq.s32.totalorder %s28, 1
      %p107 = scmp.ne.s32.totalorder %s102, %s104
      %p108 = scmp.eq.s32.totalorder %s28, 0
      %p109 = por %p107, %p108
      %p110 = scmp.ne.s32.totalorder %s102, %s104
      %p111 = scmp.eq.s32.totalorder %s33, 1
      %p112 = por %p110, %p111
      %p113 = scmp.ne.s32.totalorder %s104, %s105
      %p114 = scmp.eq.s32.totalorder %s33, 0
      %p115 = por %p113, %p114
      %p116 = scmp.ne.s32.totalorder %s104, %s105
      %p117 = scmp.eq.s32.totalorder %s34, 1
      %p118 = por %p116, %p117
      %p120 = scmp.ne.s32.totalorder %s105, %s119
      %p121 = scmp.eq.s32.totalorder %s34, 0
      %p122 = por %p120, %p121
      %s124 = sadd.s32 %s123, 1
      %p127 = scmp.eq.s32.totalorder %s28, 1
      %p128 = scmp.ne.s32.totalorder %s123, %s125
      %p129 = scmp.eq.s32.totalorder %s28, 0
      %p130 = por %p128, %p129
      %p131 = scmp.ne.s32.totalorder %s123, %s125
      %p132 = scmp.eq.s32.totalorder %s33, 1
      %p133 = por %p131, %p132
      %p134 = scmp.ne.s32.totalorder %s125, %s126
      %p135 = scmp.eq.s32.totalorder %s33, 0
      %p136 = por %p134, %p135
      %p137 = scmp.ne.s32.totalorder %s125, %s126
      %p138 = scmp.eq.s32.totalorder %s34, 1
      %p139 = por %p137, %p138
      %p141 = scmp.ne.s32.totalorder %s126, %s140
      %p142 = scmp.eq.s32.totalorder %s34, 0
      %p143 = por %p141, %p142
      %s145 = sadd.s32 %s144, 1
      %p148 = scmp.eq.s32.totalorder %s28, 1
      %p149 = scmp.ne.s32.totalorder %s144, %s146
      %p150 = scmp.eq.s32.totalorder %s28, 0
      %p151 = por %p149, %p150
      %p152 = scmp.ne.s32.totalorder %s144, %s146
      %p153 = scmp.eq.s32.totalorder %s33, 1
      %p154 = por %p152, %p153
      %p155 = scmp.ne.s32.totalorder %s146, %s147
      %p156 = scmp.eq.s32.totalorder %s33, 0
      %p157 = por %p155, %p156
      %p158 = scmp.ne.s32.totalorder %s146, %s147
      %p159 = scmp.eq.s32.totalorder %s34, 1
      %p160 = por %p158, %p159
      %p162 = scmp.ne.s32.totalorder %s147, %s161
      %p163 = scmp.eq.s32.totalorder %s34, 0
      %p164 = por %p162, %p163
      %s166 = sadd.s32 %s165, 1
      %p169 = scmp.eq.s32.totalorder %s28, 1
      %p170 = scmp.ne.s32.totalorder %s165, %s167
      %p171 = scmp.eq.s32.totalorder %s28, 0
      %p172 = por %p170, %p171
      %p173 = scmp.ne.s32.totalorder %s165, %s167
      %p174 = scmp.eq.s32.totalorder %s33, 1
      %p175 = por %p173, %p174
      %p176 = scmp.ne.s32.totalorder %s167, %s168
      %p177 = scmp.eq.s32.totalorder %s33, 0
      %p178 = por %p176, %p177
      %p179 = scmp.ne.s32.totalorder %s167, %s168
      %p180 = scmp.eq.s32.totalorder %s34, 1
      %p181 = por %p179, %p180
      %p183 = scmp.ne.s32.totalorder %s168, %s182
      %p184 = scmp.eq.s32.totalorder %s34, 0
      %p185 = por %p183, %p184
      %s187 = sadd.s32 %s186, 1
      %p190 = scmp.eq.s32.totalorder %s28, 1
      %p191 = scmp.ne.s32.totalorder %s186, %s188
      %p192 = scmp.eq.s32.totalorder %s28, 0
      %p193 = por %p191, %p192
      %p194 = scmp.ne.s32.totalorder %s186, %s188
      %p195 = scmp.eq.s32.totalorder %s33, 1
      %p196 = por %p194, %p195
      %p197 = scmp.ne.s32.totalorder %s188, %s189
      %p198 = scmp.eq.s32.totalorder %s33, 0
      %p199 = por %p197, %p198
      %p200 = scmp.ne.s32.totalorder %s188, %s189
      %p201 = scmp.eq.s32.totalorder %s34, 1
      %p202 = por %p200, %p201
      %p204 = scmp.ne.s32.totalorder %s189, %s203
      %p205 = scmp.eq.s32.totalorder %s34, 0
      %p206 = por %p204, %p205
      %s208 = sadd.s32 %s207, 1
      %p211 = scmp.eq.s32.totalorder %s28, 1
      %p212 = scmp.ne.s32.totalorder %s207, %s209
      %p213 = scmp.eq.s32.totalorder %s28, 0
      %p214 = por %p212, %p213
      %p215 = scmp.ne.s32.totalorder %s207, %s209
      %p216 = scmp.eq.s32.totalorder %s33, 1
      %p217 = por %p215, %p216
      %p218 = scmp.ne.s32.totalorder %s209, %s210
      %p219 = scmp.eq.s32.totalorder %s33, 0
      %p220 = por %p218, %p219
      %p221 = scmp.ne.s32.totalorder %s209, %s210
      %p222 = scmp.eq.s32.totalorder %s34, 1
      %p223 = por %p221, %p222
      %p225 = scmp.ne.s32.totalorder %s210, %s224
      %p226 = scmp.eq.s32.totalorder %s34, 0
      %p227 = por %p225, %p226
      %s228 = ssub.s32 %s35, %s47
      %s229 = ssub.s32 %s36, %s43
      %s230 = sor.u32 %s228, %s229
      %p231 = scmp.eq.s32.totalorder %s230, 0
      %s233 = sadd.s32 %s232, 1
      %s234 = scalar_select %p231, %s232, %s233
      %p237 = pneg %p231
      %p238 = scmp.eq.s32.totalorder %s28, 1
      %p239 = por %p237, %p238
      %p240 = scmp.ne.s32.totalorder %s232, %s235
      %p241 = scmp.eq.s32.totalorder %s28, 0
      %p242 = por %p240, %p241
      %p243 = scmp.ne.s32.totalorder %s232, %s235
      %p244 = scmp.eq.s32.totalorder %s33, 1
      %p245 = por %p243, %p244
      %p246 = scmp.ne.s32.totalorder %s235, %s236
      %p247 = scmp.eq.s32.totalorder %s33, 0
      %p248 = por %p246, %p247
      %p249 = scmp.ne.s32.totalorder %s235, %s236
      %p250 = scmp.eq.s32.totalorder %s34, 1
      %p251 = por %p249, %p250
      %p253 = scmp.ne.s32.totalorder %s236, %s252
      %p254 = scmp.eq.s32.totalorder %s34, 0
      %p255 = por %p253, %p254
      %s256 = ssub.s32 %s35, %s47
      %s257 = ssub.s32 %s36, %s43
      %s258 = sor.u32 %s256, %s257
      %p259 = scmp.eq.s32.totalorder %s258, 0
      %s261 = sadd.s32 %s260, 1
      %s262 = scalar_select %p259, %s260, %s261
      %p265 = pneg %p259
      %p266 = scmp.eq.s32.totalorder %s28, 1
      %p267 = por %p265, %p266
      %p268 = scmp.ne.s32.totalorder %s260, %s263
      %p269 = scmp.eq.s32.totalorder %s28, 0
      %p270 = por %p268, %p269
      %p271 = scmp.ne.s32.totalorder %s260, %s263
      %p272 = scmp.eq.s32.totalorder %s33, 1
      %p273 = por %p271, %p272
      %p274 = scmp.ne.s32.totalorder %s263, %s264
      %p275 = scmp.eq.s32.totalorder %s33, 0
      %p276 = por %p274, %p275
      %p277 = scmp.ne.s32.totalorder %s263, %s264
      %p278 = scmp.eq.s32.totalorder %s34, 1
      %p279 = por %p277, %p278
      %p281 = scmp.ne.s32.totalorder %s264, %s280
      %p282 = scmp.eq.s32.totalorder %s34, 0
      %p283 = por %p281, %p282
      %s284 = ssub.s32 %s35, %s47
      %s285 = ssub.s32 %s36, %s43
      %s286 = sor.u32 %s284, %s285
      %p287 = scmp.eq.s32.totalorder %s286, 0
      %s289 = sadd.s32 %s288, 1
      %s290 = scalar_select %p287, %s288, %s289
      %p293 = pneg %p287
      %p294 = scmp.eq.s32.totalorder %s28, 1
      %p295 = por %p293, %p294
      %p296 = scmp.ne.s32.totalorder %s288, %s291
      %p297 = scmp.eq.s32.totalorder %s28, 0
      %p298 = por %p296, %p297
      %p299 = scmp.ne.s32.totalorder %s288, %s291
      %p300 = scmp.eq.s32.totalorder %s33, 1
      %p301 = por %p299, %p300
      %p302 = scmp.ne.s32.totalorder %s291, %s292
      %p303 = scmp.eq.s32.totalorder %s33, 0
      %p304 = por %p302, %p303
      %p305 = scmp.ne.s32.totalorder %s291, %s292
      %p306 = scmp.eq.s32.totalorder %s34, 1
      %p307 = por %p305, %p306
      %p309 = scmp.ne.s32.totalorder %s292, %s308
      %p310 = scmp.eq.s32.totalorder %s34, 0
      %p311 = por %p309, %p310
      %p312 = scmp.le.s32.totalorder 1, %s28
      %p313 = scmp.lt.s32.totalorder %s28, 3
      %p314 = pnand %p312, %p313
      %p315 = pneg %p314
      // Predicated region
      $region9: #{tpu_custom_call.1} parent=5 // pred_check
        _
      $region10: #{tpu_custom_call.1} parent=5 // pred_check_branch
        %317 = sbr.rel (%p314) target = $region12
      $region11: #{tpu_custom_call.1} parent=5 // pred_region
        %s318 = ssub.s32 %s28, 1
        // Predicated region
        $region13: #{tpu_custom_call.1} parent=11 // pred_check
          %p319 = pneg %p115
        $region14: #{tpu_custom_call.1} parent=11 // pred_check_branch
          %321 = sbr.rel (%p319) target = $region16
        $region15: #{tpu_custom_call.1} parent=11 // pred_region
          %s323 = ssub.s32 2048, 2048
          %324 = vsyncadd [#allocation6], %s323
          %s325 = sshll.u32 [#allocation7], 4
          %s326 = int_to_ptr.vmem [resolvable:$true] %s325
          %331 = dma.hbm_to_vmem [thread:$0]  %s2, 2048, %s326, [#allocation6], 128, 128, 8
        $region16: #{tpu_custom_call.1} parent=11 // pred_fallthru
          _
        // Predicated region
        $region17: #{tpu_custom_call.1} parent=11 // pred_check
          %p332 = pneg %p136
        $region18: #{tpu_custom_call.1} parent=11 // pred_check_branch
          %334 = sbr.rel (%p332) target = $region20
        $region19: #{tpu_custom_call.1} parent=11 // pred_region
          %s336 = ssub.s32 2048, 2048
          %337 = vsyncadd [#allocation9], %s336
          %s338 = sshll.u32 [#allocation8], 4
          %s339 = int_to_ptr.vmem [resolvable:$true] %s338
          %344 = dma.hbm_to_vmem [thread:$0]  %s3, 2048, %s339, [#allocation9], 128, 128, 8
        $region20: #{tpu_custom_call.1} parent=11 // pred_fallthru
          _
        // Predicated region
        $region21: #{tpu_custom_call.1} parent=11 // pred_check
          %p345 = pneg %p157
        $region22: #{tpu_custom_call.1} parent=11 // pred_check_branch
          %347 = sbr.rel (%p345) target = $region24
        $region23: #{tpu_custom_call.1} parent=11 // pred_region
          %s349 = ssub.s32 2048, 2048
          %350 = vsyncadd [#allocation9], %s349
          %s351 = sshll.u32 [#allocation10], 4
          %s352 = int_to_ptr.vmem [resolvable:$true] %s351
          %357 = dma.hbm_to_vmem [thread:$0]  %s4, 2048, %s352, [#allocation9], 128, 128, 8
        $region24: #{tpu_custom_call.1} parent=11 // pred_fallthru
          _
        // Predicated region
        $region25: #{tpu_custom_call.1} parent=11 // pred_check
          %p358 = pneg %p178
        $region26: #{tpu_custom_call.1} parent=11 // pred_check_branch
          %360 = sbr.rel (%p358) target = $region28
        $region27: #{tpu_custom_call.1} parent=11 // pred_region
          %s362 = ssub.s32 2048, 2048
          %363 = vsyncadd [#allocation12], %s362
          %s364 = sshll.u32 [#allocation11], 4
          %s365 = int_to_ptr.vmem [resolvable:$true] %s364
          %370 = dma.hbm_to_vmem [thread:$0]  %s5, 2048, %s365, [#allocation12], 128, 128, 8
        $region28: #{tpu_custom_call.1} parent=11 // pred_fallthru
          _
        // Predicated region
        $region29: #{tpu_custom_call.1} parent=11 // pred_check
          %p371 = pneg %p199
        $region30: #{tpu_custom_call.1} parent=11 // pred_check_branch
          %373 = sbr.rel (%p371) target = $region32
        $region31: #{tpu_custom_call.1} parent=11 // pred_region
          %s375 = ssub.s32 16, 16
          %376 = vsyncadd [#allocation12], %s375
          %s378 = sshll.u32 [#allocation13], 4
          %s379 = int_to_ptr.vmem [resolvable:$true] %s378
          %381 = dma.hbm_to_vmem [thread:$0]  %s6, 16, %s379, [#allocation12]
        $region32: #{tpu_custom_call.1} parent=11 // pred_fallthru
          _
        // Predicated region
        $region33: #{tpu_custom_call.1} parent=11 // pred_check
          %p382 = pneg %p220
        $region34: #{tpu_custom_call.1} parent=11 // pred_check_branch
          %384 = sbr.rel (%p382) target = $region36
        $region35: #{tpu_custom_call.1} parent=11 // pred_region
          %s386 = ssub.s32 16, 16
          %387 = vsyncadd [#allocation15], %s386
          %s389 = sshll.u32 [#allocation14], 4
          %s390 = int_to_ptr.vmem [resolvable:$true] %s389
          %392 = dma.hbm_to_vmem [thread:$0]  %s7, 16, %s390, [#allocation15]
        $region36: #{tpu_custom_call.1} parent=11 // pred_fallthru
          _
      $region12: #{tpu_custom_call.1} parent=5 // pred_fallthru
        _
      %p393 = scmp.lt.s32.totalorder %s28, 2
      // Predicated region
      $region37: #{tpu_custom_call.1} parent=5 // pred_check
        %p394 = pneg %p393
      $region38: #{tpu_custom_call.1} parent=5 // pred_check_branch
        %396 = sbr.rel (%p394) target = $region40
      $region39: #{tpu_custom_call.1} parent=5 // pred_region
        // Predicated region
        $region41: #{tpu_custom_call.1} parent=39 // pred_check
          %p397 = pneg %p62
        $region42: #{tpu_custom_call.1} parent=39 // pred_check_branch
          %399 = sbr.rel (%p397) target = $region44
        $region43: #{tpu_custom_call.1} parent=39 // pred_region
          %s400 = sand.u32 %s28, 1
          %s401 = scalar_lea.sflag [#allocation3], %s400
          %s402 = sand.u32 %s52, 1
          %s403 = smul.addr %s402, 8
          %s404 = scalar_lea.vmem [#allocation2], %s403
          %s406 = ssub.s32 128, 128
          %407 = vsyncadd %s401, %s406
          %s408 = sadd.s32 %s36, %s35
          %s409 = smul.addr %s408, 128
          %s410 = scalar_lea.hbm %s0, %s409
          %s412 = sshll.u32 %s404, 4
          %s413 = int_to_ptr.vmem [resolvable:$true] %s412
          %415 = dma.hbm_to_vmem [thread:$0]  %s410, 128, %s413, %s401
        $region44: #{tpu_custom_call.1} parent=39 // pred_fallthru
          _
        // Predicated region
        $region45: #{tpu_custom_call.1} parent=39 // pred_check
          %p416 = pneg %p88
        $region46: #{tpu_custom_call.1} parent=39 // pred_check_branch
          %418 = sbr.rel (%p416) target = $region48
        $region47: #{tpu_custom_call.1} parent=39 // pred_region
          %s419 = sand.u32 %s28, 1
          %s420 = scalar_lea.sflag [#allocation6], %s419
          %s421 = sand.u32 %s78, 1
          %s422 = smul.addr %s421, 8
          %s423 = scalar_lea.vmem [#allocation5], %s422
          %s425 = ssub.s32 128, 128
          %426 = vsyncadd %s420, %s425
          %s427 = smul.addr %s35, 128
          %s428 = scalar_lea.hbm %s1, %s427
          %s430 = sshll.u32 %s423, 4
          %s431 = int_to_ptr.vmem [resolvable:$true] %s430
          %433 = dma.hbm_to_vmem [thread:$0]  %s428, 128, %s431, %s420
        $region48: #{tpu_custom_call.1} parent=39 // pred_fallthru
          _
        // Predicated region
        $region49: #{tpu_custom_call.1} parent=39 // pred_check
          %p434 = pneg %p242
        $region50: #{tpu_custom_call.1} parent=39 // pred_check_branch
          %436 = sbr.rel (%p434) target = $region52
        $region51: #{tpu_custom_call.1} parent=39 // pred_region
          %s437 = sand.u32 %s28, 1
          %s438 = scalar_lea.sflag [#allocation3], %s437
          %s439 = sand.u32 %s232, 1
          %s440 = smul.addr %s439, 8
          %s441 = scalar_lea.vmem [#allocation16], %s440
          %s443 = ssub.s32 128, 128
          %444 = vsyncadd %s438, %s443
          %s445 = sadd.s32 %s36, %s35
          %s446 = smul.addr %s445, 128
          %s447 = scalar_lea.hbm %s8, %s446
          %s449 = sshll.u32 %s441, 4
          %s450 = int_to_ptr.vmem [resolvable:$true] %s449
          %452 = dma.hbm_to_vmem [thread:$0]  %s447, 128, %s450, %s438
        $region52: #{tpu_custom_call.1} parent=39 // pred_fallthru
          _
        // Predicated region
        $region53: #{tpu_custom_call.1} parent=39 // pred_check
          %p453 = pneg %p270
        $region54: #{tpu_custom_call.1} parent=39 // pred_check_branch
          %455 = sbr.rel (%p453) target = $region56
        $region55: #{tpu_custom_call.1} parent=39 // pred_region
          %s456 = sand.u32 %s28, 1
          %s457 = scalar_lea.sflag [#allocation6], %s456
          %s458 = sand.u32 %s260, 1
          %s459 = smul.addr %s458, 8
          %s460 = scalar_lea.vmem [#allocation17], %s459
          %s462 = ssub.s32 128, 128
          %463 = vsyncadd %s457, %s462
          %s464 = sadd.s32 %s36, %s35
          %s465 = smul.addr %s464, 128
          %s466 = scalar_lea.hbm %s9, %s465
          %s468 = sshll.u32 %s460, 4
          %s469 = int_to_ptr.vmem [resolvable:$true] %s468
          %471 = dma.hbm_to_vmem [thread:$0]  %s466, 128, %s469, %s457
        $region56: #{tpu_custom_call.1} parent=39 // pred_fallthru
          _
      $region40: #{tpu_custom_call.1} parent=5 // pred_fallthru
        _
      %p472 = scmp.le.s32.totalorder 1, %s28
      %p473 = scmp.lt.s32.totalorder %s28, 3
      %p474 = pnand %p472, %p473
      %p475 = pneg %p474
      // Predicated region
      $region57: #{tpu_custom_call.1} parent=5 // pred_check
        _
      $region58: #{tpu_custom_call.1} parent=5 // pred_check_branch
        %477 = sbr.rel (%p474) target = $region60
      $region59: #{tpu_custom_call.1} parent=5 // pred_region
        %s478 = ssub.s32 %s28, 1
        %s479 = sand.u32 %s33, 1
        %s480 = scalar_lea.sflag [#allocation3], %s479
        %s481 = sand.u32 %s55, 1
        %s482 = smul.addr %s481, 8
        %s483 = scalar_lea.vmem [#allocation2], %s482
        // Predicated region
        $region61: #{tpu_custom_call.1} parent=59 // pred_check
          %p484 = pneg %p68
        $region62: #{tpu_custom_call.1} parent=59 // pred_check_branch
          %486 = sbr.rel (%p484) target = $region64
        $region63: #{tpu_custom_call.1} parent=59 // pred_region
          %487 = dma.done %s480, 128
        $region64: #{tpu_custom_call.1} parent=59 // pred_fallthru
          _
        %s488 = sand.u32 %s33, 1
        %s489 = scalar_lea.sflag [#allocation6], %s488
        %s490 = sand.u32 %s81, 1
        %s491 = smul.addr %s490, 8
        %s492 = scalar_lea.vmem [#allocation5], %s491
        // Predicated region
        $region65: #{tpu_custom_call.1} parent=59 // pred_check
          %p493 = pneg %p94
        $region66: #{tpu_custom_call.1} parent=59 // pred_check_branch
          %495 = sbr.rel (%p493) target = $region68
        $region67: #{tpu_custom_call.1} parent=59 // pred_region
          %496 = dma.done %s489, 128
        $region68: #{tpu_custom_call.1} parent=59 // pred_fallthru
          _
        // Predicated region
        $region69: #{tpu_custom_call.1} parent=59 // pred_check
          %p497 = pneg %p115
        $region70: #{tpu_custom_call.1} parent=59 // pred_check_branch
          %499 = sbr.rel (%p497) target = $region72
        $region71: #{tpu_custom_call.1} parent=59 // pred_region
          %500 = dma.done [#allocation6], 2048
        $region72: #{tpu_custom_call.1} parent=59 // pred_fallthru
          _
        // Predicated region
        $region73: #{tpu_custom_call.1} parent=59 // pred_check
          %p501 = pneg %p136
        $region74: #{tpu_custom_call.1} parent=59 // pred_check_branch
          %503 = sbr.rel (%p501) target = $region76
        $region75: #{tpu_custom_call.1} parent=59 // pred_region
          %504 = dma.done [#allocation9], 2048
        $region76: #{tpu_custom_call.1} parent=59 // pred_fallthru
          _
        // Predicated region
        $region77: #{tpu_custom_call.1} parent=59 // pred_check
          %p505 = pneg %p157
        $region78: #{tpu_custom_call.1} parent=59 // pred_check_branch
          %507 = sbr.rel (%p505) target = $region80
        $region79: #{tpu_custom_call.1} parent=59 // pred_region
          %508 = dma.done [#allocation9], 2048
        $region80: #{tpu_custom_call.1} parent=59 // pred_fallthru
          _
        // Predicated region
        $region81: #{tpu_custom_call.1} parent=59 // pred_check
          %p509 = pneg %p178
        $region82: #{tpu_custom_call.1} parent=59 // pred_check_branch
          %511 = sbr.rel (%p509) target = $region84
        $region83: #{tpu_custom_call.1} parent=59 // pred_region
          %512 = dma.done [#allocation12], 2048
        $region84: #{tpu_custom_call.1} parent=59 // pred_fallthru
          _
        // Predicated region
        $region85: #{tpu_custom_call.1} parent=59 // pred_check
          %p513 = pneg %p199
        $region86: #{tpu_custom_call.1} parent=59 // pred_check_branch
          %515 = sbr.rel (%p513) target = $region88
        $region87: #{tpu_custom_call.1} parent=59 // pred_region
          %516 = dma.done [#allocation12], 16
        $region88: #{tpu_custom_call.1} parent=59 // pred_fallthru
          _
        // Predicated region
        $region89: #{tpu_custom_call.1} parent=59 // pred_check
          %p517 = pneg %p220
        $region90: #{tpu_custom_call.1} parent=59 // pred_check_branch
          %519 = sbr.rel (%p517) target = $region92
        $region91: #{tpu_custom_call.1} parent=59 // pred_region
          %520 = dma.done [#allocation15], 16
        $region92: #{tpu_custom_call.1} parent=59 // pred_fallthru
          _
        %s521 = sand.u32 %s33, 1
        %s522 = scalar_lea.sflag [#allocation3], %s521
        %s523 = sand.u32 %s235, 1
        %s524 = smul.addr %s523, 8
        %s525 = scalar_lea.vmem [#allocation16], %s524
        // Predicated region
        $region93: #{tpu_custom_call.1} parent=59 // pred_check
          %p526 = pneg %p248
        $region94: #{tpu_custom_call.1} parent=59 // pred_check_branch
          %528 = sbr.rel (%p526) target = $region96
        $region95: #{tpu_custom_call.1} parent=59 // pred_region
          %529 = dma.done %s522, 128
        $region96: #{tpu_custom_call.1} parent=59 // pred_fallthru
          _
        %s530 = sand.u32 %s33, 1
        %s531 = scalar_lea.sflag [#allocation6], %s530
        %s532 = sand.u32 %s263, 1
        %s533 = smul.addr %s532, 8
        %s534 = scalar_lea.vmem [#allocation17], %s533
        // Predicated region
        $region97: #{tpu_custom_call.1} parent=59 // pred_check
          %p535 = pneg %p276
        $region98: #{tpu_custom_call.1} parent=59 // pred_check_branch
          %537 = sbr.rel (%p535) target = $region100
        $region99: #{tpu_custom_call.1} parent=59 // pred_region
          %538 = dma.done %s531, 128
        $region100: #{tpu_custom_call.1} parent=59 // pred_fallthru
          _
        %s539 = sand.u32 %s33, 1
        %s540 = scalar_lea.sflag [#allocation3], %s539
        %s541 = sand.u32 %s55, 1
        %s542 = smul.addr %s541, 8
        %s543 = scalar_lea.vmem [#allocation2], %s542
        %p544 = pneg %p68
        %p545 = pneg %p65
        %s546 = sand.u32 %s33, 1
        %s547 = scalar_lea.sflag [#allocation6], %s546
        %s548 = sand.u32 %s81, 1
        %s549 = smul.addr %s548, 8
        %s550 = scalar_lea.vmem [#allocation5], %s549
        %p551 = pneg %p94
        %p552 = pneg %p91
        %p553 = pneg %p115
        %p554 = pneg %p112
        %p555 = pneg %p136
        %p556 = pneg %p133
        %p557 = pneg %p157
        %p558 = pneg %p154
        %p559 = pneg %p178
        %p560 = pneg %p175
        %p561 = pneg %p199
        %p562 = pneg %p196
        %p563 = pneg %p220
        %p564 = pneg %p217
        %s565 = sand.u32 %s33, 1
        %s566 = scalar_lea.sflag [#allocation3], %s565
        %s567 = sand.u32 %s235, 1
        %s568 = smul.addr %s567, 8
        %s569 = scalar_lea.vmem [#allocation16], %s568
        %p570 = pneg %p248
        %p571 = pneg %p245
        %s572 = sand.u32 %s33, 1
        %s573 = scalar_lea.sflag [#allocation6], %s572
        %s574 = sand.u32 %s263, 1
        %s575 = smul.addr %s574, 8
        %s576 = scalar_lea.vmem [#allocation17], %s575
        %p577 = pneg %p276
        %p578 = pneg %p273
        %p579 = pneg %p304
        %p580 = pneg %p301
        %s581 = sand.u32 %s291, 1
        %s582 = scalar_lea.sflag [#allocation4], %s581
        %s583 = sand.u32 %s291, 1
        %s584 = smul.addr %s583, 8
        %s585 = scalar_lea.vmem [#allocation18], %s584
        %v586 = vld [vmem:[%s483] sm:$0xff]
        %v587 = vld [vmem:[%s492] sm:$0xff]
        %v588 = vld [vmem:[#allocation7] sm:$0xff]
        %v589 = vld [vmem:[#allocation7 + $0x8] sm:$0xff]
        %v590 = vld [vmem:[#allocation7 + $0x10] sm:$0xff]
        %v591 = vld [vmem:[#allocation7 + $0x18] sm:$0xff]
        %v592 = vld [vmem:[#allocation7 + $0x20] sm:$0xff]
        %v593 = vld [vmem:[#allocation7 + $0x28] sm:$0xff]
        %v594 = vld [vmem:[#allocation7 + $0x30] sm:$0xff]
        %v595 = vld [vmem:[#allocation7 + $0x38] sm:$0xff]
        %v596 = vld [vmem:[#allocation7 + $0x40] sm:$0xff]
        %v597 = vld [vmem:[#allocation7 + $0x48] sm:$0xff]
        %v598 = vld [vmem:[#allocation7 + $0x50] sm:$0xff]
        %v599 = vld [vmem:[#allocation7 + $0x58] sm:$0xff]
        %v600 = vld [vmem:[#allocation7 + $0x60] sm:$0xff]
        %v601 = vld [vmem:[#allocation7 + $0x68] sm:$0xff]
        %v602 = vld [vmem:[#allocation7 + $0x70] sm:$0xff]
        %v603 = vld [vmem:[#allocation7 + $0x78] sm:$0xff]
        %604 = vmatprep.subr.mxu0 0.0
        %605 = vmatpush1.msra.mxu0 %v588
        %606 = vmatprep.subr.mxu0 0.0
        %607 = vmatpush1.msra.mxu0 %v589
        %608 = vmatprep.subr.mxu0 0.0
        %609 = vmatpush1.msra.mxu0 %v590
        %610 = vmatprep.subr.mxu0 0.0
        %611 = vmatpush1.msra.mxu0 %v591
        %612 = vmatprep.subr.mxu0 0.0
        %613 = vmatpush1.msra.mxu0 %v592
        %614 = vmatprep.subr.mxu0 0.0
        %615 = vmatpush1.msra.mxu0 %v593
        %616 = vmatprep.subr.mxu0 0.0
        %617 = vmatpush1.msra.mxu0 %v594
        %618 = vmatprep.subr.mxu0 0.0
        %619 = vmatpush1.msra.mxu0 %v595
        %620 = vmatprep.subr.mxu0 0.0
        %621 = vmatpush1.msra.mxu0 %v596
        %622 = vmatprep.subr.mxu0 0.0
        %623 = vmatpush1.msra.mxu0 %v597
        %624 = vmatprep.subr.mxu0 0.0
        %625 = vmatpush1.msra.mxu0 %v598
        %626 = vmatprep.subr.mxu0 0.0
        %627 = vmatpush1.msra.mxu0 %v599
        %628 = vmatprep.subr.mxu0 0.0
        %629 = vmatpush1.msra.mxu0 %v600
        %630 = vmatprep.subr.mxu0 0.0
        %631 = vmatpush1.msra.mxu0 %v601
        %632 = vmatprep.subr.mxu0 0.0
        %633 = vmatpush1.msra.mxu0 %v602
        %634 = vmatprep.subr.mxu0 0.0
        %635 = vmatpush1.msra.mxu0 %v603
        %636 = vmatprep.subr.mxu0 0.0
        %637 = vmatpush1.msra.mxu0 0.0
        %638 = vmatprep.subr.mxu0 0.0
        %639 = vmatpush1.msra.mxu0 0.0
        %640 = vmatprep.subr.mxu0 0.0
        %641 = vmatpush1.msra.mxu0 0.0
        %642 = vmatprep.subr.mxu0 0.0
        %643 = vmatpush1.msra.mxu0 0.0
        %644 = vmatprep.subr.mxu0 0.0
        %645 = vmatpush1.msra.mxu0 0.0
        %646 = vmatprep.subr.mxu0 0.0
        %647 = vmatpush1.msra.mxu0 0.0
        %648 = vmatprep.subr.mxu0 0.0
        %649 = vmatpush1.msra.mxu0 0.0
        %650 = vmatprep.subr.mxu0 0.0
        %651 = vmatpush1.msra.mxu0 0.0
        %652 = vmatprep.subr.mxu0 0.0
        %653 = vmatpush1.msra.mxu0 0.0
        %654 = vmatprep.subr.mxu0 0.0
        %655 = vmatpush1.msra.mxu0 0.0
        %656 = vmatprep.subr.mxu0 0.0
        %657 = vmatpush1.msra.mxu0 0.0
        %658 = vmatprep.subr.mxu0 0.0
        %659 = vmatpush1.msra.mxu0 0.0
        %660 = vmatprep.subr.mxu0 0.0
        %661 = vmatpush1.msra.mxu0 0.0
        %662 = vmatprep.subr.mxu0 0.0
        %663 = vmatpush1.msra.mxu0 0.0
        %664 = vmatprep.subr.mxu0 0.0
        %665 = vmatpush1.msra.mxu0 0.0
        %666 = vmatprep.subr.mxu0 0.0
        %667 = vmatpush1.msra.mxu0 0.0
        %668 = vmatprep.mubr.f32.mxu0 0.0
        %669 = vmatmul.mubr.f32.gmra.mrb[0].mxu0 %v586
        %v670 = vpop.f32.mrb[0].mxu0
        %v671 = vadd.f32 0.0, %v670
        %v672 = vpop.f32.mrb[0].mxu0
        %673 = vdwg.mxu0
        %v674 = vld [vmem:[#allocation8] sm:$0xff]
        %v675 = vld [vmem:[#allocation8 + $0x8] sm:$0xff]
        %v676 = vld [vmem:[#allocation8 + $0x10] sm:$0xff]
        %v677 = vld [vmem:[#allocation8 + $0x18] sm:$0xff]
        %v678 = vld [vmem:[#allocation8 + $0x20] sm:$0xff]
        %v679 = vld [vmem:[#allocation8 + $0x28] sm:$0xff]
        %v680 = vld [vmem:[#allocation8 + $0x30] sm:$0xff]
        %v681 = vld [vmem:[#allocation8 + $0x38] sm:$0xff]
        %v682 = vld [vmem:[#allocation8 + $0x40] sm:$0xff]
        %v683 = vld [vmem:[#allocation8 + $0x48] sm:$0xff]
        %v684 = vld [vmem:[#allocation8 + $0x50] sm:$0xff]
        %v685 = vld [vmem:[#allocation8 + $0x58] sm:$0xff]
        %v686 = vld [vmem:[#allocation8 + $0x60] sm:$0xff]
        %v687 = vld [vmem:[#allocation8 + $0x68] sm:$0xff]
        %v688 = vld [vmem:[#allocation8 + $0x70] sm:$0xff]
        %v689 = vld [vmem:[#allocation8 + $0x78] sm:$0xff]
        %690 = vmatprep.subr.mxu0 0.0
        %691 = vmatpush1.msra.mxu0 %v674
        %692 = vmatprep.subr.mxu0 0.0
        %693 = vmatpush1.msra.mxu0 %v675
        %694 = vmatprep.subr.mxu0 0.0
        %695 = vmatpush1.msra.mxu0 %v676
        %696 = vmatprep.subr.mxu0 0.0
        %697 = vmatpush1.msra.mxu0 %v677
        %698 = vmatprep.subr.mxu0 0.0
        %699 = vmatpush1.msra.mxu0 %v678
        %700 = vmatprep.subr.mxu0 0.0
        %701 = vmatpush1.msra.mxu0 %v679
        %702 = vmatprep.subr.mxu0 0.0
        %703 = vmatpush1.msra.mxu0 %v680
        %704 = vmatprep.subr.mxu0 0.0
        %705 = vmatpush1.msra.mxu0 %v681
        %706 = vmatprep.subr.mxu0 0.0
        %707 = vmatpush1.msra.mxu0 %v682
        %708 = vmatprep.subr.mxu0 0.0
        %709 = vmatpush1.msra.mxu0 %v683
        %710 = vmatprep.subr.mxu0 0.0
        %711 = vmatpush1.msra.mxu0 %v684
        %712 = vmatprep.subr.mxu0 0.0
        %713 = vmatpush1.msra.mxu0 %v685
        %714 = vmatprep.subr.mxu0 0.0
        %715 = vmatpush1.msra.mxu0 %v686
        %716 = vmatprep.subr.mxu0 0.0
        %717 = vmatpush1.msra.mxu0 %v687
        %718 = vmatprep.subr.mxu0 0.0
        %719 = vmatpush1.msra.mxu0 %v688
        %720 = vmatprep.subr.mxu0 0.0
        %721 = vmatpush1.msra.mxu0 %v689
        %722 = vmatprep.subr.mxu0 0.0
        %723 = vmatpush1.msra.mxu0 0.0
        %724 = vmatprep.subr.mxu0 0.0
        %725 = vmatpush1.msra.mxu0 0.0
        %726 = vmatprep.subr.mxu0 0.0
        %727 = vmatpush1.msra.mxu0 0.0
        %728 = vmatprep.subr.mxu0 0.0
        %729 = vmatpush1.msra.mxu0 0.0
        %730 = vmatprep.subr.mxu0 0.0
        %731 = vmatpush1.msra.mxu0 0.0
        %732 = vmatprep.subr.mxu0 0.0
        %733 = vmatpush1.msra.mxu0 0.0
        %734 = vmatprep.subr.mxu0 0.0
        %735 = vmatpush1.msra.mxu0 0.0
        %736 = vmatprep.subr.mxu0 0.0
        %737 = vmatpush1.msra.mxu0 0.0
        %738 = vmatprep.subr.mxu0 0.0
        %739 = vmatpush1.msra.mxu0 0.0
        %740 = vmatprep.subr.mxu0 0.0
        %741 = vmatpush1.msra.mxu0 0.0
        %742 = vmatprep.subr.mxu0 0.0
        %743 = vmatpush1.msra.mxu0 0.0
        %744 = vmatprep.subr.mxu0 0.0
        %745 = vmatpush1.msra.mxu0 0.0
        %746 = vmatprep.subr.mxu0 0.0
        %747 = vmatpush1.msra.mxu0 0.0
        %748 = vmatprep.subr.mxu0 0.0
        %749 = vmatpush1.msra.mxu0 0.0
        %750 = vmatprep.subr.mxu0 0.0
        %751 = vmatpush1.msra.mxu0 0.0
        %752 = vmatprep.subr.mxu0 0.0
        %753 = vmatpush1.msra.mxu0 0.0
        %754 = vmatprep.mubr.f32.mxu0 0.0
        %755 = vmatmul.mubr.f32.gmra.mrb[0].mxu0 %v587
        %v756 = vpop.f32.mrb[0].mxu0
        %v757 = vadd.f32 0.0, %v756
        %v758 = vpop.f32.mrb[0].mxu0
        %759 = vdwg.mxu0
        %v760 = vld [vmem:[#allocation10] sm:$0xff]
        %v761 = vld [vmem:[#allocation10 + $0x8] sm:$0xff]
        %v762 = vld [vmem:[#allocation10 + $0x10] sm:$0xff]
        %v763 = vld [vmem:[#allocation10 + $0x18] sm:$0xff]
        %v764 = vld [vmem:[#allocation10 + $0x20] sm:$0xff]
        %v765 = vld [vmem:[#allocation10 + $0x28] sm:$0xff]
        %v766 = vld [vmem:[#allocation10 + $0x30] sm:$0xff]
        %v767 = vld [vmem:[#allocation10 + $0x38] sm:$0xff]
        %v768 = vld [vmem:[#allocation10 + $0x40] sm:$0xff]
        %v769 = vld [vmem:[#allocation10 + $0x48] sm:$0xff]
        %v770 = vld [vmem:[#allocation10 + $0x50] sm:$0xff]
        %v771 = vld [vmem:[#allocation10 + $0x58] sm:$0xff]
        %v772 = vld [vmem:[#allocation10 + $0x60] sm:$0xff]
        %v773 = vld [vmem:[#allocation10 + $0x68] sm:$0xff]
        %v774 = vld [vmem:[#allocation10 + $0x70] sm:$0xff]
        %v775 = vld [vmem:[#allocation10 + $0x78] sm:$0xff]
        %776 = vmatprep.subr.mxu0 0.0
        %777 = vmatpush1.msra.mxu0 %v760
        %778 = vmatprep.subr.mxu0 0.0
        %779 = vmatpush1.msra.mxu0 %v761
        %780 = vmatprep.subr.mxu0 0.0
        %781 = vmatpush1.msra.mxu0 %v762
        %782 = vmatprep.subr.mxu0 0.0
        %783 = vmatpush1.msra.mxu0 %v763
        %784 = vmatprep.subr.mxu0 0.0
        %785 = vmatpush1.msra.mxu0 %v764
        %786 = vmatprep.subr.mxu0 0.0
        %787 = vmatpush1.msra.mxu0 %v765
        %788 = vmatprep.subr.mxu0 0.0
        %789 = vmatpush1.msra.mxu0 %v766
        %790 = vmatprep.subr.mxu0 0.0
        %791 = vmatpush1.msra.mxu0 %v767
        %792 = vmatprep.subr.mxu0 0.0
        %793 = vmatpush1.msra.mxu0 %v768
        %794 = vmatprep.subr.mxu0 0.0
        %795 = vmatpush1.msra.mxu0 %v769
        %796 = vmatprep.subr.mxu0 0.0
        %797 = vmatpush1.msra.mxu0 %v770
        %798 = vmatprep.subr.mxu0 0.0
        %799 = vmatpush1.msra.mxu0 %v771
        %800 = vmatprep.subr.mxu0 0.0
        %801 = vmatpush1.msra.mxu0 %v772
        %802 = vmatprep.subr.mxu0 0.0
        %803 = vmatpush1.msra.mxu0 %v773
        %804 = vmatprep.subr.mxu0 0.0
        %805 = vmatpush1.msra.mxu0 %v774
        %806 = vmatprep.subr.mxu0 0.0
        %807 = vmatpush1.msra.mxu0 %v775
        %808 = vmatprep.subr.mxu0 0.0
        %809 = vmatpush1.msra.mxu0 0.0
        %810 = vmatprep.subr.mxu0 0.0
        %811 = vmatpush1.msra.mxu0 0.0
        %812 = vmatprep.subr.mxu0 0.0
        %813 = vmatpush1.msra.mxu0 0.0
        %814 = vmatprep.subr.mxu0 0.0
        %815 = vmatpush1.msra.mxu0 0.0
        %816 = vmatprep.subr.mxu0 0.0
        %817 = vmatpush1.msra.mxu0 0.0
        %818 = vmatprep.subr.mxu0 0.0
        %819 = vmatpush1.msra.mxu0 0.0
        %820 = vmatprep.subr.mxu0 0.0
        %821 = vmatpush1.msra.mxu0 0.0
        %822 = vmatprep.subr.mxu0 0.0
        %823 = vmatpush1.msra.mxu0 0.0
        %824 = vmatprep.subr.mxu0 0.0
        %825 = vmatpush1.msra.mxu0 0.0
        %826 = vmatprep.subr.mxu0 0.0
        %827 = vmatpush1.msra.mxu0 0.0
        %828 = vmatprep.subr.mxu0 0.0
        %829 = vmatpush1.msra.mxu0 0.0
        %830 = vmatprep.subr.mxu0 0.0
        %831 = vmatpush1.msra.mxu0 0.0
        %832 = vmatprep.subr.mxu0 0.0
        %833 = vmatpush1.msra.mxu0 0.0
        %834 = vmatprep.subr.mxu0 0.0
        %835 = vmatpush1.msra.mxu0 0.0
        %836 = vmatprep.subr.mxu0 0.0
        %837 = vmatpush1.msra.mxu0 0.0
        %838 = vmatprep.subr.mxu0 0.0
        %839 = vmatpush1.msra.mxu0 0.0
        %840 = vmatprep.mubr.f32.mxu0 0.0
        %841 = vmatmul.mubr.f32.gmra.mrb[0].mxu0 %v587
        %v842 = vpop.f32.mrb[0].mxu0
        %v843 = vadd.f32 0.0, %v842
        %v844 = vpop.f32.mrb[0].mxu0
        %845 = vdwg.mxu0
        %vm846 = vcmask 261120
        %v848 = vsel %vm846, %v671, 0
        %v851 = vsel %vm846, %v757, 0
        %853 = vmatprep.subr.mxu0 0.0
        %854 = vmatpush1.xpose.msra.mxu0 %v851
        %855 = vmatprep.subr.mxu0 0.0
        %856 = vmatpush1.xpose.msra.mxu0 0.0
        %857 = vmatprep.subr.mxu0 0.0
        %858 = vmatpush1.xpose.msra.mxu0 0.0
        %859 = vmatprep.subr.mxu0 0.0
        %860 = vmatpush1.xpose.msra.mxu0 0.0
        %861 = vmatprep.subr.mxu0 0.0
        %862 = vmatpush1.xpose.msra.mxu0 0.0
        %863 = vmatprep.subr.mxu0 0.0
        %864 = vmatpush1.xpose.msra.mxu0 0.0
        %865 = vmatprep.subr.mxu0 0.0
        %866 = vmatpush1.xpose.msra.mxu0 0.0
        %867 = vmatprep.subr.mxu0 0.0
        %868 = vmatpush1.xpose.msra.mxu0 0.0
        %869 = vmatprep.subr.mxu0 0.0
        %870 = vmatpush1.xpose.msra.mxu0 0.0
        %871 = vmatprep.subr.mxu0 0.0
        %872 = vmatpush1.xpose.msra.mxu0 0.0
        %873 = vmatprep.subr.mxu0 0.0
        %874 = vmatpush1.xpose.msra.mxu0 0.0
        %875 = vmatprep.subr.mxu0 0.0
        %876 = vmatpush1.xpose.msra.mxu0 0.0
        %877 = vmatprep.subr.mxu0 0.0
        %878 = vmatpush1.xpose.msra.mxu0 0.0
        %879 = vmatprep.subr.mxu0 0.0
        %880 = vmatpush1.xpose.msra.mxu0 0.0
        %881 = vmatprep.subr.mxu0 0.0
        %882 = vmatpush1.xpose.msra.mxu0 0.0
        %883 = vmatprep.subr.mxu0 0.0
        %884 = vmatpush1.xpose.msra.mxu0 0.0
        %885 = vmatprep.subr.mxu0 0.0
        %886 = vmatpush1.xpose.msra.mxu0 0.0
        %887 = vmatprep.subr.mxu0 0.0
        %888 = vmatpush1.xpose.msra.mxu0 0.0
        %889 = vmatprep.subr.mxu0 0.0
        %890 = vmatpush1.xpose.msra.mxu0 0.0
        %891 = vmatprep.subr.mxu0 0.0
        %892 = vmatpush1.xpose.msra.mxu0 0.0
        %893 = vmatprep.subr.mxu0 0.0
        %894 = vmatpush1.xpose.msra.mxu0 0.0
        %895 = vmatprep.subr.mxu0 0.0
        %896 = vmatpush1.xpose.msra.mxu0 0.0
        %897 = vmatprep.subr.mxu0 0.0
        %898 = vmatpush1.xpose.msra.mxu0 0.0
        %899 = vmatprep.subr.mxu0 0.0
        %900 = vmatpush1.xpose.msra.mxu0 0.0
        %901 = vmatprep.subr.mxu0 0.0
        %902 = vmatpush1.xpose.msra.mxu0 0.0
        %903 = vmatprep.subr.mxu0 0.0
        %904 = vmatpush1.xpose.msra.mxu0 0.0
        %905 = vmatprep.subr.mxu0 0.0
        %906 = vmatpush1.xpose.msra.mxu0 0.0
        %907 = vmatprep.subr.mxu0 0.0
        %908 = vmatpush1.xpose.msra.mxu0 0.0
        %909 = vmatprep.subr.mxu0 0.0
        %910 = vmatpush1.xpose.msra.mxu0 0.0
        %911 = vmatprep.subr.mxu0 0.0
        %912 = vmatpush1.xpose.msra.mxu0 0.0
        %913 = vmatprep.subr.mxu0 0.0
        %914 = vmatpush1.xpose.msra.mxu0 0.0
        %915 = vmatprep.subr.mxu0 0.0
        %916 = vmatpush1.xpose.msra.mxu0 0.0
        %917 = vmatprep.mubr.f32.mxu0 0.0
        %918 = vmatmul.mubr.f32.gmra.mrb[0].mxu0 %v848
        %v919 = vpop.f32.mrb[0].mxu0
        %v920 = vadd.f32 0.0, %v919
        %v921 = vpop.f32.mrb[0].mxu0
        %922 = vdwg.mxu0
        %v923 = vmul.f32 %v920, 0.088388346
        %v924 = vld [vmem:[%s525] sm:$0xff]
        %v925 = vadd.f32 %v923, %v924
        %vm926 = vcmask 64512
        %v927 = vsel %vm926, %v925, -inf
        %928 = vmax.xlane.f32.xlu0 %v927
        %v929 = vpop.xlane.xlu0 %928
        %v930 = vsub.f32 %v925, %v929
        %v931 = vmul.f32 %v930, 1.442695
        %v932 = vpow.pop %v931
        %v933 = vsel %vm926, %v932, 0.0
        %934 = vadd.xlane.f32.xlu0 %v933
        %v935 = vpop.xlane.xlu0 %934
        %v936 = vrcp.pop %v935
        %v937 = vmul.f32 %v932, %v936
        %v939 = vsel %vm926, %v937, 0
        %941 = vmatprep.subr.mxu0 0.0
        %942 = vmatpush1.msra.mxu0 %v843
        %943 = vmatprep.subr.mxu0 0.0
        %944 = vmatpush1.msra.mxu0 0.0
        %945 = vmatprep.subr.mxu0 0.0
        %946 = vmatpush1.msra.mxu0 0.0
        %947 = vmatprep.subr.mxu0 0.0
        %948 = vmatpush1.msra.mxu0 0.0
        %949 = vmatprep.subr.mxu0 0.0
        %950 = vmatpush1.msra.mxu0 0.0
        %951 = vmatprep.subr.mxu0 0.0
        %952 = vmatpush1.msra.mxu0 0.0
        %953 = vmatprep.subr.mxu0 0.0
        %954 = vmatpush1.msra.mxu0 0.0
        %955 = vmatprep.subr.mxu0 0.0
        %956 = vmatpush1.msra.mxu0 0.0
        %957 = vmatprep.subr.mxu0 0.0
        %958 = vmatpush1.msra.mxu0 0.0
        %959 = vmatprep.subr.mxu0 0.0
        %960 = vmatpush1.msra.mxu0 0.0
        %961 = vmatprep.subr.mxu0 0.0
        %962 = vmatpush1.msra.mxu0 0.0
        %963 = vmatprep.subr.mxu0 0.0
        %964 = vmatpush1.msra.mxu0 0.0
        %965 = vmatprep.subr.mxu0 0.0
        %966 = vmatpush1.msra.mxu0 0.0
        %967 = vmatprep.subr.mxu0 0.0
        %968 = vmatpush1.msra.mxu0 0.0
        %969 = vmatprep.subr.mxu0 0.0
        %970 = vmatpush1.msra.mxu0 0.0
        %971 = vmatprep.subr.mxu0 0.0
        %972 = vmatpush1.msra.mxu0 0.0
        %973 = vmatprep.subr.mxu0 0.0
        %974 = vmatpush1.msra.mxu0 0.0
        %975 = vmatprep.subr.mxu0 0.0
        %976 = vmatpush1.msra.mxu0 0.0
        %977 = vmatprep.subr.mxu0 0.0
        %978 = vmatpush1.msra.mxu0 0.0
        %979 = vmatprep.subr.mxu0 0.0
        %980 = vmatpush1.msra.mxu0 0.0
        %981 = vmatprep.subr.mxu0 0.0
        %982 = vmatpush1.msra.mxu0 0.0
        %983 = vmatprep.subr.mxu0 0.0
        %984 = vmatpush1.msra.mxu0 0.0
        %985 = vmatprep.subr.mxu0 0.0
        %986 = vmatpush1.msra.mxu0 0.0
        %987 = vmatprep.subr.mxu0 0.0
        %988 = vmatpush1.msra.mxu0 0.0
        %989 = vmatprep.subr.mxu0 0.0
        %990 = vmatpush1.msra.mxu0 0.0
        %991 = vmatprep.subr.mxu0 0.0
        %992 = vmatpush1.msra.mxu0 0.0
        %993 = vmatprep.subr.mxu0 0.0
        %994 = vmatpush1.msra.mxu0 0.0
        %995 = vmatprep.subr.mxu0 0.0
        %996 = vmatpush1.msra.mxu0 0.0
        %997 = vmatprep.subr.mxu0 0.0
        %998 = vmatpush1.msra.mxu0 0.0
        %999 = vmatprep.subr.mxu0 0.0
        %1000 = vmatpush1.msra.mxu0 0.0
        %1001 = vmatprep.subr.mxu0 0.0
        %1002 = vmatpush1.msra.mxu0 0.0
        %1003 = vmatprep.subr.mxu0 0.0
        %1004 = vmatpush1.msra.mxu0 0.0
        %1005 = vmatprep.mubr.f32.mxu0 0.0
        %1006 = vmatmul.mubr.f32.gmra.mrb[0].mxu0 %v939
        %v1007 = vpop.f32.mrb[0].mxu0
        %v1008 = vadd.f32 0.0, %v1007
        %v1009 = vpop.f32.mrb[0].mxu0
        %1010 = vdwg.mxu0
        %v1011 = vld [vmem:[#allocation11] sm:$0xff]
        %v1012 = vld [vmem:[#allocation11 + $0x8] sm:$0xff]
        %v1013 = vld [vmem:[#allocation11 + $0x10] sm:$0xff]
        %v1014 = vld [vmem:[#allocation11 + $0x18] sm:$0xff]
        %1015 = vrot.lane.b32.xlu0 %v671, 96
        %v1016 = vpop.permute.xlu0 %1015
        %1017 = vrot.lane.b32.xlu0 %v757, 96
        %v1018 = vpop.permute.xlu0 %1017
        %v1019 = vsel %vm846, %v1016, 0
        %v1021 = vsel %vm846, %v1018, 0
        %1023 = vmatprep.subr.mxu0 0.0
        %1024 = vmatpush1.xpose.msra.mxu0 %v1021
        %1025 = vmatprep.subr.mxu0 0.0
        %1026 = vmatpush1.xpose.msra.mxu0 0.0
        %1027 = vmatprep.subr.mxu0 0.0
        %1028 = vmatpush1.xpose.msra.mxu0 0.0
        %1029 = vmatprep.subr.mxu0 0.0
        %1030 = vmatpush1.xpose.msra.mxu0 0.0
        %1031 = vmatprep.subr.mxu0 0.0
        %1032 = vmatpush1.xpose.msra.mxu0 0.0
        %1033 = vmatprep.subr.mxu0 0.0
        %1034 = vmatpush1.xpose.msra.mxu0 0.0
        %1035 = vmatprep.subr.mxu0 0.0
        %1036 = vmatpush1.xpose.msra.mxu0 0.0
        %1037 = vmatprep.subr.mxu0 0.0
        %1038 = vmatpush1.xpose.msra.mxu0 0.0
        %1039 = vmatprep.subr.mxu0 0.0
        %1040 = vmatpush1.xpose.msra.mxu0 0.0
        %1041 = vmatprep.subr.mxu0 0.0
        %1042 = vmatpush1.xpose.msra.mxu0 0.0
        %1043 = vmatprep.subr.mxu0 0.0
        %1044 = vmatpush1.xpose.msra.mxu0 0.0
        %1045 = vmatprep.subr.mxu0 0.0
        %1046 = vmatpush1.xpose.msra.mxu0 0.0
        %1047 = vmatprep.subr.mxu0 0.0
        %1048 = vmatpush1.xpose.msra.mxu0 0.0
        %1049 = vmatprep.subr.mxu0 0.0
        %1050 = vmatpush1.xpose.msra.mxu0 0.0
        %1051 = vmatprep.subr.mxu0 0.0
        %1052 = vmatpush1.xpose.msra.mxu0 0.0
        %1053 = vmatprep.subr.mxu0 0.0
        %1054 = vmatpush1.xpose.msra.mxu0 0.0
        %1055 = vmatprep.subr.mxu0 0.0
        %1056 = vmatpush1.xpose.msra.mxu0 0.0
        %1057 = vmatprep.subr.mxu0 0.0
        %1058 = vmatpush1.xpose.msra.mxu0 0.0
        %1059 = vmatprep.subr.mxu0 0.0
        %1060 = vmatpush1.xpose.msra.mxu0 0.0
        %1061 = vmatprep.subr.mxu0 0.0
        %1062 = vmatpush1.xpose.msra.mxu0 0.0
        %1063 = vmatprep.subr.mxu0 0.0
        %1064 = vmatpush1.xpose.msra.mxu0 0.0
        %1065 = vmatprep.subr.mxu0 0.0
        %1066 = vmatpush1.xpose.msra.mxu0 0.0
        %1067 = vmatprep.subr.mxu0 0.0
        %1068 = vmatpush1.xpose.msra.mxu0 0.0
        %1069 = vmatprep.subr.mxu0 0.0
        %1070 = vmatpush1.xpose.msra.mxu0 0.0
        %1071 = vmatprep.subr.mxu0 0.0
        %1072 = vmatpush1.xpose.msra.mxu0 0.0
        %1073 = vmatprep.subr.mxu0 0.0
        %1074 = vmatpush1.xpose.msra.mxu0 0.0
        %1075 = vmatprep.subr.mxu0 0.0
        %1076 = vmatpush1.xpose.msra.mxu0 0.0
        %1077 = vmatprep.subr.mxu0 0.0
        %1078 = vmatpush1.xpose.msra.mxu0 0.0
        %1079 = vmatprep.subr.mxu0 0.0
        %1080 = vmatpush1.xpose.msra.mxu0 0.0
        %1081 = vmatprep.subr.mxu0 0.0
        %1082 = vmatpush1.xpose.msra.mxu0 0.0
        %1083 = vmatprep.subr.mxu0 0.0
        %1084 = vmatpush1.xpose.msra.mxu0 0.0
        %1085 = vmatprep.subr.mxu0 0.0
        %1086 = vmatpush1.xpose.msra.mxu0 0.0
        %1087 = vmatprep.mubr.f32.mxu0 0.0
        %1088 = vmatmul.mubr.f32.gmra.mrb[0].mxu0 %v1019
        %v1089 = vpop.f32.mrb[0].mxu0
        %v1090 = vadd.f32 0.0, %v1089
        %v1091 = vpop.f32.mrb[0].mxu0
        %1092 = vdwg.mxu0
        %v1093 = vmul.f32 %v1090, 0.088388346
        %v1094 = vadd.f32 %v1093, %v924
        %v1095 = vsel %vm926, %v1094, -inf
        %1096 = vmax.xlane.f32.xlu0 %v1095
        %v1097 = vpop.xlane.xlu0 %1096
        %v1098 = vsub.f32 %v1094, %v1097
        %v1099 = vmul.f32 %v1098, 1.442695
        %v1100 = vpow.pop %v1099
        %v1101 = vsel %vm926, %v1100, 0.0
        %1102 = vadd.xlane.f32.xlu0 %v1101
        %v1103 = vpop.xlane.xlu0 %1102
        %v1104 = vrcp.pop %v1103
        %v1105 = vmul.f32 %v1100, %v1104
        %1107 = vrot.lane.b32.xlu0 %v843, 96
        %v1108 = vpop.permute.xlu0 %1107
        %v1111 = vsel %vm926, %v1105, 0
        %1113 = vmatprep.subr.mxu0 0.0
        %1114 = vmatpush1.msra.mxu0 %v1108
        %1115 = vmatprep.subr.mxu0 0.0
        %1116 = vmatpush1.msra.mxu0 0.0
        %1117 = vmatprep.subr.mxu0 0.0
        %1118 = vmatpush1.msra.mxu0 0.0
        %1119 = vmatprep.subr.mxu0 0.0
        %1120 = vmatpush1.msra.mxu0 0.0
        %1121 = vmatprep.subr.mxu0 0.0
        %1122 = vmatpush1.msra.mxu0 0.0
        %1123 = vmatprep.subr.mxu0 0.0
        %1124 = vmatpush1.msra.mxu0 0.0
        %1125 = vmatprep.subr.mxu0 0.0
        %1126 = vmatpush1.msra.mxu0 0.0
        %1127 = vmatprep.subr.mxu0 0.0
        %1128 = vmatpush1.msra.mxu0 0.0
        %1129 = vmatprep.subr.mxu0 0.0
        %1130 = vmatpush1.msra.mxu0 0.0
        %1131 = vmatprep.subr.mxu0 0.0
        %1132 = vmatpush1.msra.mxu0 0.0
        %1133 = vmatprep.subr.mxu0 0.0
        %1134 = vmatpush1.msra.mxu0 0.0
        %1135 = vmatprep.subr.mxu0 0.0
        %1136 = vmatpush1.msra.mxu0 0.0
        %1137 = vmatprep.subr.mxu0 0.0
        %1138 = vmatpush1.msra.mxu0 0.0
        %1139 = vmatprep.subr.mxu0 0.0
        %1140 = vmatpush1.msra.mxu0 0.0
        %1141 = vmatprep.subr.mxu0 0.0
        %1142 = vmatpush1.msra.mxu0 0.0
        %1143 = vmatprep.subr.mxu0 0.0
        %1144 = vmatpush1.msra.mxu0 0.0
        %1145 = vmatprep.subr.mxu0 0.0
        %1146 = vmatpush1.msra.mxu0 0.0
        %1147 = vmatprep.subr.mxu0 0.0
        %1148 = vmatpush1.msra.mxu0 0.0
        %1149 = vmatprep.subr.mxu0 0.0
        %1150 = vmatpush1.msra.mxu0 0.0
        %1151 = vmatprep.subr.mxu0 0.0
        %1152 = vmatpush1.msra.mxu0 0.0
        %1153 = vmatprep.subr.mxu0 0.0
        %1154 = vmatpush1.msra.mxu0 0.0
        %1155 = vmatprep.subr.mxu0 0.0
        %1156 = vmatpush1.msra.mxu0 0.0
        %1157 = vmatprep.subr.mxu0 0.0
        %1158 = vmatpush1.msra.mxu0 0.0
        %1159 = vmatprep.subr.mxu0 0.0
        %1160 = vmatpush1.msra.mxu0 0.0
        %1161 = vmatprep.subr.mxu0 0.0
        %1162 = vmatpush1.msra.mxu0 0.0
        %1163 = vmatprep.subr.mxu0 0.0
        %1164 = vmatpush1.msra.mxu0 0.0
        %1165 = vmatprep.subr.mxu0 0.0
        %1166 = vmatpush1.msra.mxu0 0.0
        %1167 = vmatprep.subr.mxu0 0.0
        %1168 = vmatpush1.msra.mxu0 0.0
        %1169 = vmatprep.subr.mxu0 0.0
        %1170 = vmatpush1.msra.mxu0 0.0
        %1171 = vmatprep.subr.mxu0 0.0
        %1172 = vmatpush1.msra.mxu0 0.0
        %1173 = vmatprep.subr.mxu0 0.0
        %1174 = vmatpush1.msra.mxu0 0.0
        %1175 = vmatprep.subr.mxu0 0.0
        %1176 = vmatpush1.msra.mxu0 0.0
        %1177 = vmatprep.mubr.f32.mxu0 0.0
        %1178 = vmatmul.mubr.f32.gmra.mrb[0].mxu0 %v1111
        %v1179 = vpop.f32.mrb[0].mxu0
        %v1180 = vadd.f32 0.0, %v1179
        %v1181 = vpop.f32.mrb[0].mxu0
        %1182 = vdwg.mxu0
        %v1183 = vld [vmem:[#allocation11 + $0x20] sm:$0xff]
        %v1184 = vld [vmem:[#allocation11 + $0x28] sm:$0xff]
        %v1185 = vld [vmem:[#allocation11 + $0x30] sm:$0xff]
        %v1186 = vld [vmem:[#allocation11 + $0x38] sm:$0xff]
        %v1188 = vsel %vm846, %v1180, 0
        %1190 = vmatprep.subr.mxu0 0.0
        %1191 = vmatpush1.msra.mxu0 %v1183
        %1192 = vmatprep.subr.mxu0 0.0
        %1193 = vmatpush1.msra.mxu0 %v1184
        %1194 = vmatprep.subr.mxu0 0.0
        %1195 = vmatpush1.msra.mxu0 %v1185
        %1196 = vmatprep.subr.mxu0 0.0
        %1197 = vmatpush1.msra.mxu0 %v1186
        %1198 = vmatprep.subr.mxu0 0.0
        %1199 = vmatpush1.msra.mxu0 0.0
        %1200 = vmatprep.subr.mxu0 0.0
        %1201 = vmatpush1.msra.mxu0 0.0
        %1202 = vmatprep.subr.mxu0 0.0
        %1203 = vmatpush1.msra.mxu0 0.0
        %1204 = vmatprep.subr.mxu0 0.0
        %1205 = vmatpush1.msra.mxu0 0.0
        %1206 = vmatprep.subr.mxu0 0.0
        %1207 = vmatpush1.msra.mxu0 0.0
        %1208 = vmatprep.subr.mxu0 0.0
        %1209 = vmatpush1.msra.mxu0 0.0
        %1210 = vmatprep.subr.mxu0 0.0
        %1211 = vmatpush1.msra.mxu0 0.0
        %1212 = vmatprep.subr.mxu0 0.0
        %1213 = vmatpush1.msra.mxu0 0.0
        %1214 = vmatprep.subr.mxu0 0.0
        %1215 = vmatpush1.msra.mxu0 0.0
        %1216 = vmatprep.subr.mxu0 0.0
        %1217 = vmatpush1.msra.mxu0 0.0
        %1218 = vmatprep.subr.mxu0 0.0
        %1219 = vmatpush1.msra.mxu0 0.0
        %1220 = vmatprep.subr.mxu0 0.0
        %1221 = vmatpush1.msra.mxu0 0.0
        %1222 = vmatprep.subr.mxu0 0.0
        %1223 = vmatpush1.msra.mxu0 0.0
        %1224 = vmatprep.subr.mxu0 0.0
        %1225 = vmatpush1.msra.mxu0 0.0
        %1226 = vmatprep.subr.mxu0 0.0
        %1227 = vmatpush1.msra.mxu0 0.0
        %1228 = vmatprep.subr.mxu0 0.0
        %1229 = vmatpush1.msra.mxu0 0.0
        %1230 = vmatprep.subr.mxu0 0.0
        %1231 = vmatpush1.msra.mxu0 0.0
        %1232 = vmatprep.subr.mxu0 0.0
        %1233 = vmatpush1.msra.mxu0 0.0
        %1234 = vmatprep.subr.mxu0 0.0
        %1235 = vmatpush1.msra.mxu0 0.0
        %1236 = vmatprep.subr.mxu0 0.0
        %1237 = vmatpush1.msra.mxu0 0.0
        %1238 = vmatprep.subr.mxu0 0.0
        %1239 = vmatpush1.msra.mxu0 0.0
        %1240 = vmatprep.subr.mxu0 0.0
        %1241 = vmatpush1.msra.mxu0 0.0
        %1242 = vmatprep.subr.mxu0 0.0
        %1243 = vmatpush1.msra.mxu0 0.0
        %1244 = vmatprep.subr.mxu0 0.0
        %1245 = vmatpush1.msra.mxu0 0.0
        %1246 = vmatprep.subr.mxu0 0.0
        %1247 = vmatpush1.msra.mxu0 0.0
        %1248 = vmatprep.subr.mxu0 0.0
        %1249 = vmatpush1.msra.mxu0 0.0
        %1250 = vmatprep.subr.mxu0 0.0
        %1251 = vmatpush1.msra.mxu0 0.0
        %1252 = vmatprep.subr.mxu0 0.0
        %1253 = vmatpush1.msra.mxu0 0.0
        %1254 = vmatprep.mubr.f32.mxu0 0.0
        %1255 = vmatmul.mubr.f32.gmra.mrb[0].mxu0 %v1188
        %v1256 = vpop.f32.mrb[0].mxu0
        %v1257 = vadd.f32 0.0, %v1256
        %v1258 = vpop.f32.mrb[0].mxu0
        %1259 = vdwg.mxu0
        %v1261 = vsel %vm846, %v1008, 0
        %1263 = vmatprep.subr.mxu0 0.0
        %1264 = vmatpush1.msra.mxu0 %v1011
        %1265 = vmatprep.subr.mxu0 0.0
        %1266 = vmatpush1.msra.mxu0 %v1012
        %1267 = vmatprep.subr.mxu0 0.0
        %1268 = vmatpush1.msra.mxu0 %v1013
        %1269 = vmatprep.subr.mxu0 0.0
        %1270 = vmatpush1.msra.mxu0 %v1014
        %1271 = vmatprep.subr.mxu0 0.0
        %1272 = vmatpush1.msra.mxu0 0.0
        %1273 = vmatprep.subr.mxu0 0.0
        %1274 = vmatpush1.msra.mxu0 0.0
        %1275 = vmatprep.subr.mxu0 0.0
        %1276 = vmatpush1.msra.mxu0 0.0
        %1277 = vmatprep.subr.mxu0 0.0
        %1278 = vmatpush1.msra.mxu0 0.0
        %1279 = vmatprep.subr.mxu0 0.0
        %1280 = vmatpush1.msra.mxu0 0.0
        %1281 = vmatprep.subr.mxu0 0.0
        %1282 = vmatpush1.msra.mxu0 0.0
        %1283 = vmatprep.subr.mxu0 0.0
        %1284 = vmatpush1.msra.mxu0 0.0
        %1285 = vmatprep.subr.mxu0 0.0
        %1286 = vmatpush1.msra.mxu0 0.0
        %1287 = vmatprep.subr.mxu0 0.0
        %1288 = vmatpush1.msra.mxu0 0.0
        %1289 = vmatprep.subr.mxu0 0.0
        %1290 = vmatpush1.msra.mxu0 0.0
        %1291 = vmatprep.subr.mxu0 0.0
        %1292 = vmatpush1.msra.mxu0 0.0
        %1293 = vmatprep.subr.mxu0 0.0
        %1294 = vmatpush1.msra.mxu0 0.0
        %1295 = vmatprep.subr.mxu0 0.0
        %1296 = vmatpush1.msra.mxu0 0.0
        %1297 = vmatprep.subr.mxu0 0.0
        %1298 = vmatpush1.msra.mxu0 0.0
        %1299 = vmatprep.subr.mxu0 0.0
        %1300 = vmatpush1.msra.mxu0 0.0
        %1301 = vmatprep.subr.mxu0 0.0
        %1302 = vmatpush1.msra.mxu0 0.0
        %1303 = vmatprep.subr.mxu0 0.0
        %1304 = vmatpush1.msra.mxu0 0.0
        %1305 = vmatprep.subr.mxu0 0.0
        %1306 = vmatpush1.msra.mxu0 0.0
        %1307 = vmatprep.subr.mxu0 0.0
        %1308 = vmatpush1.msra.mxu0 0.0
        %1309 = vmatprep.subr.mxu0 0.0
        %1310 = vmatpush1.msra.mxu0 0.0
        %1311 = vmatprep.subr.mxu0 0.0
        %1312 = vmatpush1.msra.mxu0 0.0
        %1313 = vmatprep.subr.mxu0 0.0
        %1314 = vmatpush1.msra.mxu0 0.0
        %1315 = vmatprep.subr.mxu0 0.0
        %1316 = vmatpush1.msra.mxu0 0.0
        %1317 = vmatprep.subr.mxu0 0.0
        %1318 = vmatpush1.msra.mxu0 0.0
        %1319 = vmatprep.subr.mxu0 0.0
        %1320 = vmatpush1.msra.mxu0 0.0
        %1321 = vmatprep.subr.mxu0 0.0
        %1322 = vmatpush1.msra.mxu0 0.0
        %1323 = vmatprep.subr.mxu0 0.0
        %1324 = vmatpush1.msra.mxu0 0.0
        %1325 = vmatprep.subr.mxu0 0.0
        %1326 = vmatpush1.msra.mxu0 0.0
        %1327 = vmatprep.mubr.f32.mxu0 0.0
        %1328 = vmatmul.mubr.f32.gmra.mrb[0].mxu0 %v1261
        %v1329 = vpop.f32.mrb[0].mxu0
        %v1330 = vadd.f32 %v1257, %v1329
        %v1331 = vpop.f32.mrb[0].mxu0
        %1332 = vdwg.mxu0
        %1333 = vrot.lane.b32.xlu0 %v671, 64
        %v1334 = vpop.permute.xlu0 %1333
        %1335 = vrot.lane.b32.xlu0 %v757, 64
        %v1336 = vpop.permute.xlu0 %1335
        %v1337 = vsel %vm846, %v1334, 0
        %v1339 = vsel %vm846, %v1336, 0
        %1341 = vmatprep.subr.mxu0 0.0
        %1342 = vmatpush1.xpose.msra.mxu0 %v1339
        %1343 = vmatprep.subr.mxu0 0.0
        %1344 = vmatpush1.xpose.msra.mxu0 0.0
        %1345 = vmatprep.subr.mxu0 0.0
        %1346 = vmatpush1.xpose.msra.mxu0 0.0
        %1347 = vmatprep.subr.mxu0 0.0
        %1348 = vmatpush1.xpose.msra.mxu0 0.0
        %1349 = vmatprep.subr.mxu0 0.0
        %1350 = vmatpush1.xpose.msra.mxu0 0.0
        %1351 = vmatprep.subr.mxu0 0.0
        %1352 = vmatpush1.xpose.msra.mxu0 0.0
        %1353 = vmatprep.subr.mxu0 0.0
        %1354 = vmatpush1.xpose.msra.mxu0 0.0
        %1355 = vmatprep.subr.mxu0 0.0
        %1356 = vmatpush1.xpose.msra.mxu0 0.0
        %1357 = vmatprep.subr.mxu0 0.0
        %1358 = vmatpush1.xpose.msra.mxu0 0.0
        %1359 = vmatprep.subr.mxu0 0.0
        %1360 = vmatpush1.xpose.msra.mxu0 0.0
        %1361 = vmatprep.subr.mxu0 0.0
        %1362 = vmatpush1.xpose.msra.mxu0 0.0
        %1363 = vmatprep.subr.mxu0 0.0
        %1364 = vmatpush1.xpose.msra.mxu0 0.0
        %1365 = vmatprep.subr.mxu0 0.0
        %1366 = vmatpush1.xpose.msra.mxu0 0.0
        %1367 = vmatprep.subr.mxu0 0.0
        %1368 = vmatpush1.xpose.msra.mxu0 0.0
        %1369 = vmatprep.subr.mxu0 0.0
        %1370 = vmatpush1.xpose.msra.mxu0 0.0
        %1371 = vmatprep.subr.mxu0 0.0
        %1372 = vmatpush1.xpose.msra.mxu0 0.0
        %1373 = vmatprep.subr.mxu0 0.0
        %1374 = vmatpush1.xpose.msra.mxu0 0.0
        %1375 = vmatprep.subr.mxu0 0.0
        %1376 = vmatpush1.xpose.msra.mxu0 0.0
        %1377 = vmatprep.subr.mxu0 0.0
        %1378 = vmatpush1.xpose.msra.mxu0 0.0
        %1379 = vmatprep.subr.mxu0 0.0
        %1380 = vmatpush1.xpose.msra.mxu0 0.0
        %1381 = vmatprep.subr.mxu0 0.0
        %1382 = vmatpush1.xpose.msra.mxu0 0.0
        %1383 = vmatprep.subr.mxu0 0.0
        %1384 = vmatpush1.xpose.msra.mxu0 0.0
        %1385 = vmatprep.subr.mxu0 0.0
        %1386 = vmatpush1.xpose.msra.mxu0 0.0
        %1387 = vmatprep.subr.mxu0 0.0
        %1388 = vmatpush1.xpose.msra.mxu0 0.0
        %1389 = vmatprep.subr.mxu0 0.0
        %1390 = vmatpush1.xpose.msra.mxu0 0.0
        %1391 = vmatprep.subr.mxu0 0.0
        %1392 = vmatpush1.xpose.msra.mxu0 0.0
        %1393 = vmatprep.subr.mxu0 0.0
        %1394 = vmatpush1.xpose.msra.mxu0 0.0
        %1395 = vmatprep.subr.mxu0 0.0
        %1396 = vmatpush1.xpose.msra.mxu0 0.0
        %1397 = vmatprep.subr.mxu0 0.0
        %1398 = vmatpush1.xpose.msra.mxu0 0.0
        %1399 = vmatprep.subr.mxu0 0.0
        %1400 = vmatpush1.xpose.msra.mxu0 0.0
        %1401 = vmatprep.subr.mxu0 0.0
        %1402 = vmatpush1.xpose.msra.mxu0 0.0
        %1403 = vmatprep.subr.mxu0 0.0
        %1404 = vmatpush1.xpose.msra.mxu0 0.0
        %1405 = vmatprep.mubr.f32.mxu0 0.0
        %1406 = vmatmul.mubr.f32.gmra.mrb[0].mxu0 %v1337
        %v1407 = vpop.f32.mrb[0].mxu0
        %v1408 = vadd.f32 0.0, %v1407
        %v1409 = vpop.f32.mrb[0].mxu0
        %1410 = vdwg.mxu0
        %v1411 = vmul.f32 %v1408, 0.088388346
        %v1412 = vadd.f32 %v1411, %v924
        %v1413 = vsel %vm926, %v1412, -inf
        %1414 = vmax.xlane.f32.xlu0 %v1413
        %v1415 = vpop.xlane.xlu0 %1414
        %v1416 = vsub.f32 %v1412, %v1415
        %v1417 = vmul.f32 %v1416, 1.442695
        %v1418 = vpow.pop %v1417
        %v1419 = vsel %vm926, %v1418, 0.0
        %1420 = vadd.xlane.f32.xlu0 %v1419
        %v1421 = vpop.xlane.xlu0 %1420
        %v1422 = vrcp.pop %v1421
        %v1423 = vmul.f32 %v1418, %v1422
        %1424 = vrot.lane.b32.xlu0 %v843, 64
        %v1425 = vpop.permute.xlu0 %1424
        %v1428 = vsel %vm926, %v1423, 0
        %1430 = vmatprep.subr.mxu0 0.0
        %1431 = vmatpush1.msra.mxu0 %v1425
        %1432 = vmatprep.subr.mxu0 0.0
        %1433 = vmatpush1.msra.mxu0 0.0
        %1434 = vmatprep.subr.mxu0 0.0
        %1435 = vmatpush1.msra.mxu0 0.0
        %1436 = vmatprep.subr.mxu0 0.0
        %1437 = vmatpush1.msra.mxu0 0.0
        %1438 = vmatprep.subr.mxu0 0.0
        %1439 = vmatpush1.msra.mxu0 0.0
        %1440 = vmatprep.subr.mxu0 0.0
        %1441 = vmatpush1.msra.mxu0 0.0
        %1442 = vmatprep.subr.mxu0 0.0
        %1443 = vmatpush1.msra.mxu0 0.0
        %1444 = vmatprep.subr.mxu0 0.0
        %1445 = vmatpush1.msra.mxu0 0.0
        %1446 = vmatprep.subr.mxu0 0.0
        %1447 = vmatpush1.msra.mxu0 0.0
        %1448 = vmatprep.subr.mxu0 0.0
        %1449 = vmatpush1.msra.mxu0 0.0
        %1450 = vmatprep.subr.mxu0 0.0
        %1451 = vmatpush1.msra.mxu0 0.0
        %1452 = vmatprep.subr.mxu0 0.0
        %1453 = vmatpush1.msra.mxu0 0.0
        %1454 = vmatprep.subr.mxu0 0.0
        %1455 = vmatpush1.msra.mxu0 0.0
        %1456 = vmatprep.subr.mxu0 0.0
        %1457 = vmatpush1.msra.mxu0 0.0
        %1458 = vmatprep.subr.mxu0 0.0
        %1459 = vmatpush1.msra.mxu0 0.0
        %1460 = vmatprep.subr.mxu0 0.0
        %1461 = vmatpush1.msra.mxu0 0.0
        %1462 = vmatprep.subr.mxu0 0.0
        %1463 = vmatpush1.msra.mxu0 0.0
        %1464 = vmatprep.subr.mxu0 0.0
        %1465 = vmatpush1.msra.mxu0 0.0
        %1466 = vmatprep.subr.mxu0 0.0
        %1467 = vmatpush1.msra.mxu0 0.0
        %1468 = vmatprep.subr.mxu0 0.0
        %1469 = vmatpush1.msra.mxu0 0.0
        %1470 = vmatprep.subr.mxu0 0.0
        %1471 = vmatpush1.msra.mxu0 0.0
        %1472 = vmatprep.subr.mxu0 0.0
        %1473 = vmatpush1.msra.mxu0 0.0
        %1474 = vmatprep.subr.mxu0 0.0
        %1475 = vmatpush1.msra.mxu0 0.0
        %1476 = vmatprep.subr.mxu0 0.0
        %1477 = vmatpush1.msra.mxu0 0.0
        %1478 = vmatprep.subr.mxu0 0.0
        %1479 = vmatpush1.msra.mxu0 0.0
        %1480 = vmatprep.subr.mxu0 0.0
        %1481 = vmatpush1.msra.mxu0 0.0
        %1482 = vmatprep.subr.mxu0 0.0
        %1483 = vmatpush1.msra.mxu0 0.0
        %1484 = vmatprep.subr.mxu0 0.0
        %1485 = vmatpush1.msra.mxu0 0.0
        %1486 = vmatprep.subr.mxu0 0.0
        %1487 = vmatpush1.msra.mxu0 0.0
        %1488 = vmatprep.subr.mxu0 0.0
        %1489 = vmatpush1.msra.mxu0 0.0
        %1490 = vmatprep.subr.mxu0 0.0
        %1491 = vmatpush1.msra.mxu0 0.0
        %1492 = vmatprep.subr.mxu0 0.0
        %1493 = vmatpush1.msra.mxu0 0.0
        %1494 = vmatprep.mubr.f32.mxu0 0.0
        %1495 = vmatmul.mubr.f32.gmra.mrb[0].mxu0 %v1428
        %v1496 = vpop.f32.mrb[0].mxu0
        %v1497 = vadd.f32 0.0, %v1496
        %v1498 = vpop.f32.mrb[0].mxu0
        %1499 = vdwg.mxu0
        %v1500 = vld [vmem:[#allocation11 + $0x40] sm:$0xff]
        %v1501 = vld [vmem:[#allocation11 + $0x48] sm:$0xff]
        %v1502 = vld [vmem:[#allocation11 + $0x50] sm:$0xff]
        %v1503 = vld [vmem:[#allocation11 + $0x58] sm:$0xff]
        %v1505 = vsel %vm846, %v1497, 0
        %1507 = vmatprep.subr.mxu0 0.0
        %1508 = vmatpush1.msra.mxu0 %v1500
        %1509 = vmatprep.subr.mxu0 0.0
        %1510 = vmatpush1.msra.mxu0 %v1501
        %1511 = vmatprep.subr.mxu0 0.0
        %1512 = vmatpush1.msra.mxu0 %v1502
        %1513 = vmatprep.subr.mxu0 0.0
        %1514 = vmatpush1.msra.mxu0 %v1503
        %1515 = vmatprep.subr.mxu0 0.0
        %1516 = vmatpush1.msra.mxu0 0.0
        %1517 = vmatprep.subr.mxu0 0.0
        %1518 = vmatpush1.msra.mxu0 0.0
        %1519 = vmatprep.subr.mxu0 0.0
        %1520 = vmatpush1.msra.mxu0 0.0
        %1521 = vmatprep.subr.mxu0 0.0
        %1522 = vmatpush1.msra.mxu0 0.0
        %1523 = vmatprep.subr.mxu0 0.0
        %1524 = vmatpush1.msra.mxu0 0.0
        %1525 = vmatprep.subr.mxu0 0.0
        %1526 = vmatpush1.msra.mxu0 0.0
        %1527 = vmatprep.subr.mxu0 0.0
        %1528 = vmatpush1.msra.mxu0 0.0
        %1529 = vmatprep.subr.mxu0 0.0
        %1530 = vmatpush1.msra.mxu0 0.0
        %1531 = vmatprep.subr.mxu0 0.0
        %1532 = vmatpush1.msra.mxu0 0.0
        %1533 = vmatprep.subr.mxu0 0.0
        %1534 = vmatpush1.msra.mxu0 0.0
        %1535 = vmatprep.subr.mxu0 0.0
        %1536 = vmatpush1.msra.mxu0 0.0
        %1537 = vmatprep.subr.mxu0 0.0
        %1538 = vmatpush1.msra.mxu0 0.0
        %1539 = vmatprep.subr.mxu0 0.0
        %1540 = vmatpush1.msra.mxu0 0.0
        %1541 = vmatprep.subr.mxu0 0.0
        %1542 = vmatpush1.msra.mxu0 0.0
        %1543 = vmatprep.subr.mxu0 0.0
        %1544 = vmatpush1.msra.mxu0 0.0
        %1545 = vmatprep.subr.mxu0 0.0
        %1546 = vmatpush1.msra.mxu0 0.0
        %1547 = vmatprep.subr.mxu0 0.0
        %1548 = vmatpush1.msra.mxu0 0.0
        %1549 = vmatprep.subr.mxu0 0.0
        %1550 = vmatpush1.msra.mxu0 0.0
        %1551 = vmatprep.subr.mxu0 0.0
        %1552 = vmatpush1.msra.mxu0 0.0
        %1553 = vmatprep.subr.mxu0 0.0
        %1554 = vmatpush1.msra.mxu0 0.0
        %1555 = vmatprep.subr.mxu0 0.0
        %1556 = vmatpush1.msra.mxu0 0.0
        %1557 = vmatprep.subr.mxu0 0.0
        %1558 = vmatpush1.msra.mxu0 0.0
        %1559 = vmatprep.subr.mxu0 0.0
        %1560 = vmatpush1.msra.mxu0 0.0
        %1561 = vmatprep.subr.mxu0 0.0
        %1562 = vmatpush1.msra.mxu0 0.0
        %1563 = vmatprep.subr.mxu0 0.0
        %1564 = vmatpush1.msra.mxu0 0.0
        %1565 = vmatprep.subr.mxu0 0.0
        %1566 = vmatpush1.msra.mxu0 0.0
        %1567 = vmatprep.subr.mxu0 0.0
        %1568 = vmatpush1.msra.mxu0 0.0
        %1569 = vmatprep.subr.mxu0 0.0
        %1570 = vmatpush1.msra.mxu0 0.0
        %1571 = vmatprep.mubr.f32.mxu0 0.0
        %1572 = vmatmul.mubr.f32.gmra.mrb[0].mxu0 %v1505
        %v1573 = vpop.f32.mrb[0].mxu0
        %v1574 = vadd.f32 0.0, %v1573
        %v1575 = vpop.f32.mrb[0].mxu0
        %1576 = vdwg.mxu0
        %v1577 = vadd.f32 %v1330, %v1574
        %1578 = vrot.lane.b32.xlu0 %v671, 32
        %v1579 = vpop.permute.xlu0 %1578
        %1580 = vrot.lane.b32.xlu0 %v757, 32
        %v1581 = vpop.permute.xlu0 %1580
        %v1582 = vsel %vm846, %v1579, 0
        %v1584 = vsel %vm846, %v1581, 0
        %1586 = vmatprep.subr.mxu0 0.0
        %1587 = vmatpush1.xpose.msra.mxu0 %v1584
        %1588 = vmatprep.subr.mxu0 0.0
        %1589 = vmatpush1.xpose.msra.mxu0 0.0
        %1590 = vmatprep.subr.mxu0 0.0
        %1591 = vmatpush1.xpose.msra.mxu0 0.0
        %1592 = vmatprep.subr.mxu0 0.0
        %1593 = vmatpush1.xpose.msra.mxu0 0.0
        %1594 = vmatprep.subr.mxu0 0.0
        %1595 = vmatpush1.xpose.msra.mxu0 0.0
        %1596 = vmatprep.subr.mxu0 0.0
        %1597 = vmatpush1.xpose.msra.mxu0 0.0
        %1598 = vmatprep.subr.mxu0 0.0
        %1599 = vmatpush1.xpose.msra.mxu0 0.0
        %1600 = vmatprep.subr.mxu0 0.0
        %1601 = vmatpush1.xpose.msra.mxu0 0.0
        %1602 = vmatprep.subr.mxu0 0.0
        %1603 = vmatpush1.xpose.msra.mxu0 0.0
        %1604 = vmatprep.subr.mxu0 0.0
        %1605 = vmatpush1.xpose.msra.mxu0 0.0
        %1606 = vmatprep.subr.mxu0 0.0
        %1607 = vmatpush1.xpose.msra.mxu0 0.0
        %1608 = vmatprep.subr.mxu0 0.0
        %1609 = vmatpush1.xpose.msra.mxu0 0.0
        %1610 = vmatprep.subr.mxu0 0.0
        %1611 = vmatpush1.xpose.msra.mxu0 0.0
        %1612 = vmatprep.subr.mxu0 0.0
        %1613 = vmatpush1.xpose.msra.mxu0 0.0
        %1614 = vmatprep.subr.mxu0 0.0
        %1615 = vmatpush1.xpose.msra.mxu0 0.0
        %1616 = vmatprep.subr.mxu0 0.0
        %1617 = vmatpush1.xpose.msra.mxu0 0.0
        %1618 = vmatprep.subr.mxu0 0.0
        %1619 = vmatpush1.xpose.msra.mxu0 0.0
        %1620 = vmatprep.subr.mxu0 0.0
        %1621 = vmatpush1.xpose.msra.mxu0 0.0
        %1622 = vmatprep.subr.mxu0 0.0
        %1623 = vmatpush1.xpose.msra.mxu0 0.0
        %1624 = vmatprep.subr.mxu0 0.0
        %1625 = vmatpush1.xpose.msra.mxu0 0.0
        %1626 = vmatprep.subr.mxu0 0.0
        %1627 = vmatpush1.xpose.msra.mxu0 0.0
        %1628 = vmatprep.subr.mxu0 0.0
        %1629 = vmatpush1.xpose.msra.mxu0 0.0
        %1630 = vmatprep.subr.mxu0 0.0
        %1631 = vmatpush1.xpose.msra.mxu0 0.0
        %1632 = vmatprep.subr.mxu0 0.0
        %1633 = vmatpush1.xpose.msra.mxu0 0.0
        %1634 = vmatprep.subr.mxu0 0.0
        %1635 = vmatpush1.xpose.msra.mxu0 0.0
        %1636 = vmatprep.subr.mxu0 0.0
        %1637 = vmatpush1.xpose.msra.mxu0 0.0
        %1638 = vmatprep.subr.mxu0 0.0
        %1639 = vmatpush1.xpose.msra.mxu0 0.0
        %1640 = vmatprep.subr.mxu0 0.0
        %1641 = vmatpush1.xpose.msra.mxu0 0.0
        %1642 = vmatprep.subr.mxu0 0.0
        %1643 = vmatpush1.xpose.msra.mxu0 0.0
        %1644 = vmatprep.subr.mxu0 0.0
        %1645 = vmatpush1.xpose.msra.mxu0 0.0
        %1646 = vmatprep.subr.mxu0 0.0
        %1647 = vmatpush1.xpose.msra.mxu0 0.0
        %1648 = vmatprep.subr.mxu0 0.0
        %1649 = vmatpush1.xpose.msra.mxu0 0.0
        %1650 = vmatprep.mubr.f32.mxu0 0.0
        %1651 = vmatmul.mubr.f32.gmra.mrb[0].mxu0 %v1582
        %v1652 = vpop.f32.mrb[0].mxu0
        %v1653 = vadd.f32 0.0, %v1652
        %v1654 = vpop.f32.mrb[0].mxu0
        %1655 = vdwg.mxu0
        %v1656 = vmul.f32 %v1653, 0.088388346
        %v1657 = vadd.f32 %v1656, %v924
        %v1658 = vsel %vm926, %v1657, -inf
        %1659 = vmax.xlane.f32.xlu0 %v1658
        %v1660 = vpop.xlane.xlu0 %1659
        %v1661 = vsub.f32 %v1657, %v1660
        %v1662 = vmul.f32 %v1661, 1.442695
        %v1663 = vpow.pop %v1662
        %v1664 = vsel %vm926, %v1663, 0.0
        %1665 = vadd.xlane.f32.xlu0 %v1664
        %v1666 = vpop.xlane.xlu0 %1665
        %v1667 = vrcp.pop %v1666
        %v1668 = vmul.f32 %v1663, %v1667
        %1669 = vrot.lane.b32.xlu0 %v843, 32
        %v1670 = vpop.permute.xlu0 %1669
        %v1673 = vsel %vm926, %v1668, 0
        %1675 = vmatprep.subr.mxu0 0.0
        %1676 = vmatpush1.msra.mxu0 %v1670
        %1677 = vmatprep.subr.mxu0 0.0
        %1678 = vmatpush1.msra.mxu0 0.0
        %1679 = vmatprep.subr.mxu0 0.0
        %1680 = vmatpush1.msra.mxu0 0.0
        %1681 = vmatprep.subr.mxu0 0.0
        %1682 = vmatpush1.msra.mxu0 0.0
        %1683 = vmatprep.subr.mxu0 0.0
        %1684 = vmatpush1.msra.mxu0 0.0
        %1685 = vmatprep.subr.mxu0 0.0
        %1686 = vmatpush1.msra.mxu0 0.0
        %1687 = vmatprep.subr.mxu0 0.0
        %1688 = vmatpush1.msra.mxu0 0.0
        %1689 = vmatprep.subr.mxu0 0.0
        %1690 = vmatpush1.msra.mxu0 0.0
        %1691 = vmatprep.subr.mxu0 0.0
        %1692 = vmatpush1.msra.mxu0 0.0
        %1693 = vmatprep.subr.mxu0 0.0
        %1694 = vmatpush1.msra.mxu0 0.0
        %1695 = vmatprep.subr.mxu0 0.0
        %1696 = vmatpush1.msra.mxu0 0.0
        %1697 = vmatprep.subr.mxu0 0.0
        %1698 = vmatpush1.msra.mxu0 0.0
        %1699 = vmatprep.subr.mxu0 0.0
        %1700 = vmatpush1.msra.mxu0 0.0
        %1701 = vmatprep.subr.mxu0 0.0
        %1702 = vmatpush1.msra.mxu0 0.0
        %1703 = vmatprep.subr.mxu0 0.0
        %1704 = vmatpush1.msra.mxu0 0.0
        %1705 = vmatprep.subr.mxu0 0.0
        %1706 = vmatpush1.msra.mxu0 0.0
        %1707 = vmatprep.subr.mxu0 0.0
        %1708 = vmatpush1.msra.mxu0 0.0
        %1709 = vmatprep.subr.mxu0 0.0
        %1710 = vmatpush1.msra.mxu0 0.0
        %1711 = vmatprep.subr.mxu0 0.0
        %1712 = vmatpush1.msra.mxu0 0.0
        %1713 = vmatprep.subr.mxu0 0.0
        %1714 = vmatpush1.msra.mxu0 0.0
        %1715 = vmatprep.subr.mxu0 0.0
        %1716 = vmatpush1.msra.mxu0 0.0
        %1717 = vmatprep.subr.mxu0 0.0
        %1718 = vmatpush1.msra.mxu0 0.0
        %1719 = vmatprep.subr.mxu0 0.0
        %1720 = vmatpush1.msra.mxu0 0.0
        %1721 = vmatprep.subr.mxu0 0.0
        %1722 = vmatpush1.msra.mxu0 0.0
        %1723 = vmatprep.subr.mxu0 0.0
        %1724 = vmatpush1.msra.mxu0 0.0
        %1725 = vmatprep.subr.mxu0 0.0
        %1726 = vmatpush1.msra.mxu0 0.0
        %1727 = vmatprep.subr.mxu0 0.0
        %1728 = vmatpush1.msra.mxu0 0.0
        %1729 = vmatprep.subr.mxu0 0.0
        %1730 = vmatpush1.msra.mxu0 0.0
        %1731 = vmatprep.subr.mxu0 0.0
        %1732 = vmatpush1.msra.mxu0 0.0
        %1733 = vmatprep.subr.mxu0 0.0
        %1734 = vmatpush1.msra.mxu0 0.0
        %1735 = vmatprep.subr.mxu0 0.0
        %1736 = vmatpush1.msra.mxu0 0.0
        %1737 = vmatprep.subr.mxu0 0.0
        %1738 = vmatpush1.msra.mxu0 0.0
        %1739 = vmatprep.mubr.f32.mxu0 0.0
        %1740 = vmatmul.mubr.f32.gmra.mrb[0].mxu0 %v1673
        %v1741 = vpop.f32.mrb[0].mxu0
        %v1742 = vadd.f32 0.0, %v1741
        %v1743 = vpop.f32.mrb[0].mxu0
        %1744 = vdwg.mxu0
        %v1745 = vld [vmem:[#allocation11 + $0x60] sm:$0xff]
        %v1746 = vld [vmem:[#allocation11 + $0x68] sm:$0xff]
        %v1747 = vld [vmem:[#allocation11 + $0x70] sm:$0xff]
        %v1748 = vld [vmem:[#allocation11 + $0x78] sm:$0xff]
        %v1750 = vsel %vm846, %v1742, 0
        %1752 = vmatprep.subr.mxu0 0.0
        %1753 = vmatpush1.msra.mxu0 %v1745
        %1754 = vmatprep.subr.mxu0 0.0
        %1755 = vmatpush1.msra.mxu0 %v1746
        %1756 = vmatprep.subr.mxu0 0.0
        %1757 = vmatpush1.msra.mxu0 %v1747
        %1758 = vmatprep.subr.mxu0 0.0
        %1759 = vmatpush1.msra.mxu0 %v1748
        %1760 = vmatprep.subr.mxu0 0.0
        %1761 = vmatpush1.msra.mxu0 0.0
        %1762 = vmatprep.subr.mxu0 0.0
        %1763 = vmatpush1.msra.mxu0 0.0
        %1764 = vmatprep.subr.mxu0 0.0
        %1765 = vmatpush1.msra.mxu0 0.0
        %1766 = vmatprep.subr.mxu0 0.0
        %1767 = vmatpush1.msra.mxu0 0.0
        %1768 = vmatprep.subr.mxu0 0.0
        %1769 = vmatpush1.msra.mxu0 0.0
        %1770 = vmatprep.subr.mxu0 0.0
        %1771 = vmatpush1.msra.mxu0 0.0
        %1772 = vmatprep.subr.mxu0 0.0
        %1773 = vmatpush1.msra.mxu0 0.0
        %1774 = vmatprep.subr.mxu0 0.0
        %1775 = vmatpush1.msra.mxu0 0.0
        %1776 = vmatprep.subr.mxu0 0.0
        %1777 = vmatpush1.msra.mxu0 0.0
        %1778 = vmatprep.subr.mxu0 0.0
        %1779 = vmatpush1.msra.mxu0 0.0
        %1780 = vmatprep.subr.mxu0 0.0
        %1781 = vmatpush1.msra.mxu0 0.0
        %1782 = vmatprep.subr.mxu0 0.0
        %1783 = vmatpush1.msra.mxu0 0.0
        %1784 = vmatprep.subr.mxu0 0.0
        %1785 = vmatpush1.msra.mxu0 0.0
        %1786 = vmatprep.subr.mxu0 0.0
        %1787 = vmatpush1.msra.mxu0 0.0
        %1788 = vmatprep.subr.mxu0 0.0
        %1789 = vmatpush1.msra.mxu0 0.0
        %1790 = vmatprep.subr.mxu0 0.0
        %1791 = vmatpush1.msra.mxu0 0.0
        %1792 = vmatprep.subr.mxu0 0.0
        %1793 = vmatpush1.msra.mxu0 0.0
        %1794 = vmatprep.subr.mxu0 0.0
        %1795 = vmatpush1.msra.mxu0 0.0
        %1796 = vmatprep.subr.mxu0 0.0
        %1797 = vmatpush1.msra.mxu0 0.0
        %1798 = vmatprep.subr.mxu0 0.0
        %1799 = vmatpush1.msra.mxu0 0.0
        %1800 = vmatprep.subr.mxu0 0.0
        %1801 = vmatpush1.msra.mxu0 0.0
        %1802 = vmatprep.subr.mxu0 0.0
        %1803 = vmatpush1.msra.mxu0 0.0
        %1804 = vmatprep.subr.mxu0 0.0
        %1805 = vmatpush1.msra.mxu0 0.0
        %1806 = vmatprep.subr.mxu0 0.0
        %1807 = vmatpush1.msra.mxu0 0.0
        %1808 = vmatprep.subr.mxu0 0.0
        %1809 = vmatpush1.msra.mxu0 0.0
        %1810 = vmatprep.subr.mxu0 0.0
        %1811 = vmatpush1.msra.mxu0 0.0
        %1812 = vmatprep.subr.mxu0 0.0
        %1813 = vmatpush1.msra.mxu0 0.0
        %1814 = vmatprep.subr.mxu0 0.0
        %1815 = vmatpush1.msra.mxu0 0.0
        %1816 = vmatprep.mubr.f32.mxu0 0.0
        %1817 = vmatmul.mubr.f32.gmra.mrb[0].mxu0 %v1750
        %v1818 = vpop.f32.mrb[0].mxu0
        %v1819 = vadd.f32 0.0, %v1818
        %v1820 = vpop.f32.mrb[0].mxu0
        %1821 = vdwg.mxu0
        %v1822 = vadd.f32 %v1577, %v1819
        %v1823 = vadd.f32 %v1822, %v586
        %1824 = vadd.xlane.f32.xlu0 %v1823
        %v1825 = vpop.xlane.xlu0 %1824
        %v1826 = vrcp.pop 128.0
        %v1827 = vmul.f32 %v1825, %v1826
        %v1828 = vsub.f32 %v1823, %v1827
        %v1829 = vmul.f32 %v1828, %v1828
        %1830 = vadd.xlane.f32.xlu0 %v1829
        %v1831 = vpop.xlane.xlu0 %1830
        %v1832 = vmul.f32 %v1831, %v1826
        %v1833 = vadd.f32 %v1832, 1e-05
        %v1834 = vrsqrt.pop %v1833
        %v1835 = vmul.f32 %v1828, %v1834
        %v1836 = vld [vmem:[#allocation13] sm:$0x1]
        %v1838 = vlaneseq
        %v1839 = vshrl.u32 %v1838, 7
        %v1840 = vsub.s32 0, %v1839
        %v1841 = vrot.slane %v1836, %v1840
        %v1843 = vmul.f32 %v1835, %v1841
        %v1844 = vld [vmem:[#allocation14] sm:$0x1]
        %v1846 = vlaneseq
        %v1847 = vshrl.u32 %v1846, 7
        %v1848 = vsub.s32 0, %v1847
        %v1849 = vrot.slane %v1844, %v1848
        %v1851 = vadd.f32 %v1843, %v1849
        %v1852 = vld [vmem:[%s534] sm:$0xff]
        %1854 = vset.pattern.permute.xlu0 0
        %1855 = vperm.xlu0 %1854, %v1852
        %v1856 = vpop.permute.xlu0 %1855
        %v1858 = vmul.f32 %v1851, %v1856
        %1859 = vst [vmem:[%s585] sm:$0xff] %v1858
        %s1860 = sand.u32 %s291, 1
        %s1861 = scalar_lea.sflag [#allocation4], %s1860
        %s1862 = sand.u32 %s291, 1
        %s1863 = smul.addr %s1862, 8
        %s1864 = scalar_lea.vmem [#allocation18], %s1863
        // Predicated region
        $region101: #{tpu_custom_call.1} parent=59 // pred_check
          %p1865 = pneg %p301
        $region102: #{tpu_custom_call.1} parent=59 // pred_check_branch
          %1867 = sbr.rel (%p1865) target = $region104
        $region103: #{tpu_custom_call.1} parent=59 // pred_region
          %s1869 = ssub.s32 128, 128
          %1870 = vsyncadd %s1861, %s1869
          %s1871 = sadd.s32 %s38, %s37
          %s1872 = smul.addr %s1871, 128
          %s1873 = scalar_lea.hbm %s10, %s1872
          %s1875 = sshll.u32 %s1864, 4
          %s1876 = int_to_ptr.vmem [resolvable:$true] %s1875
          %1878 = dma.vmem_to_hbm [thread:$0]  %s1876, 128, %s1873, %s1861
        $region104: #{tpu_custom_call.1} parent=59 // pred_fallthru
          _
      $region60: #{tpu_custom_call.1} parent=5 // pred_fallthru
        _
      %p1879 = scmp.le.s32.totalorder 2, %s28
      // Predicated region
      $region105: #{tpu_custom_call.1} parent=5 // pred_check
        %p1880 = pneg %p1879
      $region106: #{tpu_custom_call.1} parent=5 // pred_check_branch
        %1882 = sbr.rel (%p1880) target = $region108
      $region107: #{tpu_custom_call.1} parent=5 // pred_region
        %s1883 = ssub.s32 %s28, 2
        // Predicated region
        $region109: #{tpu_custom_call.1} parent=107 // pred_check
          %p1884 = pneg %p307
        $region110: #{tpu_custom_call.1} parent=107 // pred_check_branch
          %1886 = sbr.rel (%p1884) target = $region112
        $region111: #{tpu_custom_call.1} parent=107 // pred_region
          %s1887 = sand.u32 %s292, 1
          %s1888 = scalar_lea.sflag [#allocation4], %s1887
          %s1889 = sand.u32 %s292, 1
          %s1890 = smul.addr %s1889, 8
          %s1891 = scalar_lea.vmem [#allocation18], %s1890
          %1892 = dma.done %s1888, 128
        $region112: #{tpu_custom_call.1} parent=107 // pred_fallthru
          _
      $region108: #{tpu_custom_call.1} parent=5 // pred_fallthru
        _
    $region6: #{tpu_custom_call.1} parent=1 // loop_footer
      %s32 = sadd.s32 1, %s28
    $region7: #{tpu_custom_call.1} parent=1 // loop_footer_branch
      %27 = sbr.rel target = $region3
    $region8: #{tpu_custom_call.1} parent=1 // loop_exit
      _
    %1893 = vsyncpa [#allocation3], 1
    %s1894 = scalar_lea.sflag [#allocation3], 1
    %1895 = vsyncpa %s1894, 1
    %1896 = vsyncpa [#allocation6], 1
    %s1897 = scalar_lea.sflag [#allocation6], 1
    %1898 = vsyncpa %s1897, 1
    %1899 = vsyncpa [#allocation9], 1
    %1900 = vsyncpa [#allocation12], 1
    %1901 = vsyncpa [#allocation15], 1
    %1902 = vsyncpa [#allocation4], 1
    %s1903 = scalar_lea.sflag [#allocation4], 1
    %1904 = vsyncpa %s1903, 1

</llo_original>
